<compile_context>
chip_gen: v5e
topology: v5e:2x2
jax: 0.10.0
libtpu: 0.0.40
codegen_flags: <defaults>
</compile_context>

<pallas_src>
import functools

import jax
import jax.numpy as jnp
from jax.experimental import pallas as pl
from jax.experimental.pallas import tpu as pltpu

LN_EPS = 1e-5
NEG_MASK = -1e9


# ----------------------- per-generation tiling defaults ---------------------- #

def _vmem_capacity_bytes():
    try:
        if hasattr(pltpu, "get_tpu_info"):
            info = pltpu.get_tpu_info()
            for name in ("vmem_capacity_bytes", "vmem_size_bytes", "vmem_bytes"):
                v = getattr(info, name, None)
                if v:
                    return int(v)
    except Exception:
        pass
    return 64 * 1024 * 1024          # conservative (v7x-sized) fallback


_VMEM_CAP = _vmem_capacity_bytes()
if _VMEM_CAP >= 128 * 1024 * 1024:   # v5e / v6e: 128 MiB VMEM -> bigger tiles
    TM, TN, TK = 512, 512, 512
    VMEM_LIMIT = 100 * 1024 * 1024
else:                                # v7x: 64 MiB VMEM
    TM, TN, TK = 256, 256, 512
    VMEM_LIMIT = 48 * 1024 * 1024

TQ, TKV = 256, 128                   # attention q / kv tiles (tkv=128: spill relief)


def _tile(dim, target):
    """Largest power-of-two-shrunk target that divides dim, else the full dim."""
    t = target
    while t >= 8:
        if dim % t == 0:
            return t
        t //= 2
    return dim


# ------------------------------ matmul kernels ------------------------------- #

def _qkv_kernel(x_ref, w_ref, o_ref, acc_ref):
    """Fused q/k/v projection: o[j] = x @ w[j] for j in {q,k,v}.

    x_ref: (tm, tk) bf16 ; w_ref: (3, tk, E) bf16 ; o_ref/acc_ref: (3, tm, E).
    The activation tile is read ONCE and reused for all three projections.
    """
    k = pl.program_id(1)

    @pl.when(k == 0)
    def _():
        acc_ref[...] = jnp.zeros_like(acc_ref)

    x = x_ref[...]
    for j in range(3):
        acc_ref[j] += jnp.dot(x, w_ref[j], preferred_element_type=jnp.float32)

    @pl.when(k == pl.num_programs(1) - 1)
    def _():
        o_ref[...] = acc_ref[...].astype(o_ref.dtype)


def _mm_bias_relu_kernel(x_ref, w_ref, b_ref, o_ref, acc_ref):
    """o = relu(x @ w + b)   (fc1 + threshold; relu_dropout is identity)."""
    k = pl.program_id(2)

    @pl.when(k == 0)
    def _():
        acc_ref[...] = jnp.zeros_like(acc_ref)

    acc_ref[...] += jnp.dot(x_ref[...], w_ref[...],
                            preferred_element_type=jnp.float32)

    @pl.when(k == pl.num_programs(2) - 1)
    def _():
        y = acc_ref[...] + b_ref[...]
        o_ref[...] = jnp.maximum(y, 0.0).astype(o_ref.dtype)


def _mm_res_ln_kernel(*refs, has_bias, apply_ln, eps=LN_EPS):
    """o = [LayerNorm](residual + x @ w [+ b])  -- fused matmul epilogue."""
    if has_bias:
        x_ref, w_ref, b_ref, res_ref, g_ref, beta_ref, o_ref, acc_ref = refs
    else:
        x_ref, w_ref, res_ref, g_ref, beta_ref, o_ref, acc_ref = refs
        b_ref = None

    k = pl.program_id(1)

    @pl.when(k == 0)
    def _():
        acc_ref[...] = jnp.zeros_like(acc_ref)

    acc_ref[...] += jnp.dot(x_ref[...], w_ref[...],
                            preferred_element_type=jnp.float32)

    @pl.when(k == pl.num_programs(1) - 1)
    def _():
        y = acc_ref[...]
        if b_ref is not None:
            y = y + b_ref[...]
        y = y + res_ref[...].astype(jnp.float32)
        if apply_ln:
            mean = jnp.mean(y, axis=-1, keepdims=True)
            var = jnp.mean(jnp.square(y - mean), axis=-1, keepdims=True)
            y = (y - mean) * jax.lax.rsqrt(var + eps) * g_ref[...] + beta_ref[...]
        o_ref[...] = y.astype(o_ref.dtype)


def _layernorm_kernel(x_ref, g_ref, b_ref, o_ref, *, eps=LN_EPS):
    """Standalone LayerNorm (only used on the normalize_before=True path)."""
    x = x_ref[...].astype(jnp.float32)
    mean = jnp.mean(x, axis=-1, keepdims=True)
    var = jnp.mean(jnp.square(x - mean), axis=-1, keepdims=True)
    o_ref[...] = ((x - mean) * jax.lax.rsqrt(var + eps)
                  * g_ref[...] + b_ref[...]).astype(o_ref.dtype)


# ------------------------------ attention kernel ----------------------------- #

def _attn_kernel(q_ref, k_ref, v_ref, mask_ref, o_ref, m_sc, l_sc, acc_sc,
                 *, num_heads):
    """Flash-style attention for one (batch, q-tile); online softmax over KV tiles.

    q_ref/k_ref/v_ref: (1, 1, t, E) bf16 slices of the stacked (3, B, S, E) qkv.
    Heads are static lane slices of width dh; q is pre-scaled (fold into wq).
    """
    ki = pl.program_id(2)

    @pl.when(ki == 0)
    def _():
        m_sc[...] = jnp.full_like(m_sc, -jnp.inf)
        l_sc[...] = jnp.zeros_like(l_sc)
        acc_sc[...] = jnp.zeros_like(acc_sc)

    mask = mask_ref[0]                           # (1, tkv) additive key-pad mask
    E = q_ref.shape[-1]
    dh = E // num_heads

    for h in range(num_heads):                   # unrolled; static lane slices
        sl = slice(h * dh, (h + 1) * dh)
        qh = q_ref[0, 0, :, sl]                  # (tq,  dh) — sliced at the Ref
        kh = k_ref[0, 0, :, sl]                  # (tkv, dh)
        vh = v_ref[0, 0, :, sl]                  # (tkv, dh)

        # scores: contract on dim 1 of both operands (no k.T materialization)
        s = jax.lax.dot_general(qh, kh, (((1,), (1,)), ((), ())),
                                preferred_element_type=jnp.float32)
        s = s + mask                             # (tq, tkv) + (1, tkv)

        m_prev = m_sc[h]                         # (tq, 1)
        m_new = jnp.maximum(m_prev, jnp.max(s, axis=-1, keepdims=True))
        alpha = jnp.exp(m_prev - m_new)
        p = jnp.exp(s - m_new)

        l_sc[h] = alpha * l_sc[h] + jnp.sum(p, axis=-1, keepdims=True)
        acc_sc[h] = alpha * acc_sc[h] + jnp.dot(
            p.astype(vh.dtype), vh, preferred_element_type=jnp.float32)
        m_sc[h] = m_new

    @pl.when(ki == pl.num_programs(2) - 1)
    def _():
        # Gather per-head results and do a single lane-dense (tq, E) store.
        outs = [acc_sc[h] * pl.reciprocal(l_sc[h], approx=True)
                for h in range(num_heads)]
        o_ref[0] = jnp.concatenate(outs, axis=-1).astype(o_ref.dtype)


# ------------------------------ Pallas wrappers ------------------------------ #

def pallas_qkv(x, wqkv_t, *, out_dtype=jnp.bfloat16, tm=None, tk=None):
    """x: (M, E) bf16; wqkv_t: (3, E, E) bf16. Returns stacked (3, M, E)."""
    M, K = x.shape
    _, _, E = wqkv_t.shape
    tm = TM if tm is None else tm
    tk = _tile(K, TK if tk is None else tk)

    # VMEM audit for the full-3E-resident accumulator / output.
    def _need(t):
        return (3 * t * E * 4 + 2 * 3 * t * E * 2 + 2 * 3 * tk * E * 2
                + 2 * t * tk * 2)
    while tm > 64 and _need(tm) > int(0.75 * VMEM_LIMIT):
        tm //= 2
    tm = _tile(M, tm)

    return pl.pallas_call(
        _qkv_kernel,
        out_shape=jax.ShapeDtypeStruct((3, M, E), out_dtype),
        grid=(M // tm, K // tk),
        in_specs=[pl.BlockSpec((tm, tk), lambda i, k: (i, k)),
                  pl.BlockSpec((3, tk, E), lambda i, k: (0, k, 0))],
        out_specs=pl.BlockSpec((3, tm, E), lambda i, k: (0, i, 0)),
        scratch_shapes=[pltpu.VMEM((3, tm, E), jnp.float32)],
        compiler_params=pltpu.CompilerParams(
            dimension_semantics=("parallel", "arbitrary"),
            vmem_limit_bytes=VMEM_LIMIT),
    )(x, wqkv_t)


def pallas_matmul_bias_relu(x, w_t, b, *, out_dtype=jnp.bfloat16,
                            tm=None, tn=None, tk=None):
    M, K = x.shape
    _, N = w_t.shape
    tm = _tile(M, TM if tm is None else tm)
    tn = _tile(N, TN if tn is None else tn)
    tk = _tile(K, TK if tk is None else tk)
    return pl.pallas_call(
        _mm_bias_relu_kernel,
        out_shape=jax.ShapeDtypeStruct((M, N), out_dtype),
        grid=(M // tm, N // tn, K // tk),
        in_specs=[pl.BlockSpec((tm, tk), lambda i, j, k: (i, k)),
                  pl.BlockSpec((tk, tn), lambda i, j, k: (k, j)),
                  pl.BlockSpec((1, tn), lambda i, j, k: (0, j))],
        out_specs=pl.BlockSpec((tm, tn), lambda i, j, k: (i, j)),
        scratch_shapes=[pltpu.VMEM((tm, tn), jnp.float32)],
        compiler_params=pltpu.CompilerParams(
            dimension_semantics=("parallel", "parallel", "arbitrary"),
            vmem_limit_bytes=VMEM_LIMIT),
    )(x, w_t, b)


def pallas_matmul_res_ln(x, w_t, b, res, gamma, beta, *, apply_ln,
                         out_dtype=jnp.bfloat16, tm=None, tk=None):
    """out = [LN](res + x @ w_t [+ b]); N (== E) kept whole for the LN reduction."""
    M, K = x.shape
    _, N = w_t.shape
    tm = TM if tm is None else tm
    tk = _tile(K, TK if tk is None else tk)
    has_bias = b is not None
    out_b = jnp.dtype(out_dtype).itemsize

    # VMEM audit: full-N epilogue scales linearly in E (tight on v7x at large E).
    def _need(t):
        return (t * N * 4 + 2 * t * N * out_b + 2 * t * N * 2
                + 2 * tk * N * 2 + 2 * t * tk * 2 + 8 * N * 4)
    while tm > 64 and _need(tm) > int(0.75 * VMEM_LIMIT):
        tm //= 2
    tm = _tile(M, tm)

    in_specs = [pl.BlockSpec((tm, tk), lambda i, k: (i, k)),
                pl.BlockSpec((tk, N), lambda i, k: (k, 0))]
    args = [x, w_t]
    if has_bias:
        in_specs.append(pl.BlockSpec((1, N), lambda i, k: (0, 0)))
        args.append(b)
    in_specs += [pl.BlockSpec((tm, N), lambda i, k: (i, 0)),
                 pl.BlockSpec((1, N), lambda i, k: (0, 0)),
                 pl.BlockSpec((1, N), lambda i, k: (0, 0))]
    args += [res, gamma, beta]

    return pl.pallas_call(
        functools.partial(_mm_res_ln_kernel, has_bias=has_bias, apply_ln=apply_ln),
        out_shape=jax.ShapeDtypeStruct((M, N), out_dtype),
        grid=(M // tm, K // tk),
        in_specs=in_specs,
        out_specs=pl.BlockSpec((tm, N), lambda i, k: (i, 0)),
        scratch_shapes=[pltpu.VMEM((tm, N), jnp.float32)],
        compiler_params=pltpu.CompilerParams(
            dimension_semantics=("parallel", "arbitrary"),
            vmem_limit_bytes=VMEM_LIMIT),
    )(*args)


def pallas_layer_norm(x, gamma, beta, *, tm=None):
    M, E = x.shape
    tm = _tile(M, TM if tm is None else tm)
    return pl.pallas_call(
        _layernorm_kernel,
        out_shape=jax.ShapeDtypeStruct((M, E), x.dtype),
        grid=(M // tm,),
        in_specs=[pl.BlockSpec((tm, E), lambda i: (i, 0)),
                  pl.BlockSpec((1, E), lambda i: (0, 0)),
                  pl.BlockSpec((1, E), lambda i: (0, 0))],
        out_specs=pl.BlockSpec((tm, E), lambda i: (i, 0)),
        compiler_params=pltpu.CompilerParams(
            dimension_semantics=("parallel",), vmem_limit_bytes=VMEM_LIMIT),
    )(x, gamma, beta)


def pallas_attention(qkv, add_mask, *, num_heads, tq=None, tkv=None):
    """qkv: (3, B, S, E) bf16 (q pre-scaled); add_mask: (B, 1, S) f32 additive."""
    _, B, S, E = qkv.shape
    dh = E // num_heads
    tq = _tile(S, TQ if tq is None else tq)
    tkv = _tile(S, TKV if tkv is None else tkv)

    q_spec = pl.BlockSpec((1, 1, tq, E), lambda b, qi, ki: (0, b, qi, 0))
    k_spec = pl.BlockSpec((1, 1, tkv, E), lambda b, qi, ki: (1, b, ki, 0))
    v_spec = pl.BlockSpec((1, 1, tkv, E), lambda b, qi, ki: (2, b, ki, 0))
    m_spec = pl.BlockSpec((1, 1, tkv), lambda b, qi, ki: (b, 0, ki))
    o_spec = pl.BlockSpec((1, tq, E), lambda b, qi, ki: (b, qi, 0))

    return pl.pallas_call(
        functools.partial(_attn_kernel, num_heads=num_heads),
        out_shape=jax.ShapeDtypeStruct((B, S, E), jnp.bfloat16),
        grid=(B, S // tq, S // tkv),
        in_specs=[q_spec, k_spec, v_spec, m_spec],
        out_specs=o_spec,
        scratch_shapes=[pltpu.VMEM((num_heads, tq, 1), jnp.float32),    # m
                        pltpu.VMEM((num_heads, tq, 1), jnp.float32),    # l
                        pltpu.VMEM((num_heads, tq, dh), jnp.float32)],  # acc
        compiler_params=pltpu.CompilerParams(
            dimension_semantics=("parallel", "parallel", "arbitrary"),
            vmem_limit_bytes=VMEM_LIMIT),
    )(qkv, qkv, qkv, add_mask)


# --------------------------- encoder layer forward --------------------------- #

def transformer_encoder_layer(x, key_padding_mask, params, *, num_heads,
                              normalize_before=False):
    """x: (S, B, E) f32; key_padding_mask: (B, S) bool (True = padded key)."""
    S, B, E = x.shape
    H = num_heads

    # single layout change, fused with the one-time f32 -> bf16 cast
    x_bm = x.astype(jnp.bfloat16).transpose(1, 0, 2).reshape(B * S, E)

    # ---------------- self-attention block ----------------
    residual = x_bm
    h = pallas_layer_norm(x_bm, params["ln0_g"], params["ln0_b"]) if normalize_before else x_bm

    # fused bias-free q/k/v projection (1/sqrt(dh) folded into the q weight)
    qkv = pallas_qkv(h, params["wqkv_t"]).reshape(3, B, S, E)   # bf16, free reshape

    # NOTE: fully-padded sequences get a finite (-1e9) mask (uniform avg, not NaN).
    add_mask = jnp.where(key_padding_mask, NEG_MASK, 0.0).astype(jnp.float32)
    add_mask = add_mask.reshape(B, 1, S)                        # no H-times repeat

    attn = pallas_attention(qkv, add_mask, num_heads=H)         # (B, S, E) bf16

    # out_proj (bias=False) fused with residual add (+ post-norm LN0); bf16 out
    x2d = pallas_matmul_res_ln(attn.reshape(B * S, E), params["wo_t"], None,
                               residual, params["ln0_g"], params["ln0_b"],
                               apply_ln=not normalize_before,
                               out_dtype=jnp.bfloat16)

    # ---------------- feed-forward block ----------------
    residual = x2d
    h = pallas_layer_norm(x2d, params["ln1_g"], params["ln1_b"]) if normalize_before else x2d

    h = pallas_matmul_bias_relu(h, params["fc1_w_t"], params["fc1_b"])   # fc1+relu
    out2d = pallas_matmul_res_ln(h, params["fc2_w_t"], params["fc2_b"], residual,
                                 params["ln1_g"], params["ln1_b"],
                                 apply_ln=not normalize_before,
                                 out_dtype=jnp.float32)

    return out2d.reshape(B, S, E).transpose(1, 0, 2)             # back to (S, B, E)


# -------------------------------- parameter init ----------------------------- #

def xavier_uniform(key, shape):
    # torch Linear weight shape is (out_features, in_features)
    fan_out, fan_in = shape
    bound = (6.0 / (fan_in + fan_out)) ** 0.5
    return jax.random.uniform(key, shape, jnp.float32, -bound, bound)


def make_params(key, E, H, FFN):
    k_in, k_out, k_fc1, k_fc2 = jax.random.split(key, 4)
    in_proj_w = xavier_uniform(k_in, (3 * E, E))                  # (3E, E) like torch
    wq, wk, wv = in_proj_w[:E], in_proj_w[E:2 * E], in_proj_w[2 * E:]
    dh = E // H
    scale = dh ** -0.5
    bf16 = jnp.bfloat16
    # fused (3, E, E) weight: planes q (pre-scaled), k, v; each is W.T (x @ W.T)
    wqkv_t = jnp.stack([(wq * scale).T, wk.T, wv.T], axis=0).astype(bf16)
    return {
        "wqkv_t": wqkv_t,                                         # (3, E, E) bf16
        "wo_t": xavier_uniform(k_out, (E, E)).T.astype(bf16),     # (E, E) bf16
        # FFN (xavier weights, zero bias per Linear() helper)
        "fc1_w_t": xavier_uniform(k_fc1, (FFN, E)).T.astype(bf16),  # (E, FFN)
        "fc1_b": jnp.zeros((1, FFN), jnp.float32),
        "fc2_w_t": xavier_uniform(k_fc2, (E, FFN)).T.astype(bf16),  # (FFN, E)
        "fc2_b": jnp.zeros((1, E), jnp.float32),
        # LayerNorms (f32)
        "ln0_g": jnp.ones((1, E), jnp.float32),
        "ln0_b": jnp.zeros((1, E), jnp.float32),
        "ln1_g": jnp.ones((1, E), jnp.float32),
        "ln1_b": jnp.zeros((1, E), jnp.float32),
    }


if __name__ == "__main__":
    # Small shapes consistent with the module: seq=8, batch=2, embed=32,
    # heads=4, ffn=64 (embed divisible by heads).
    S, B, E, H, FFN = 8, 2, 32, 4, 64
    key = jax.random.PRNGKey(0)
    k_params, k_x = jax.random.split(key, 2)

    params = make_params(k_params, E, H, FFN)
    x = jax.random.normal(k_x, (S, B, E), jnp.float32)
    # key_padding_mask: True = padded key position (last two positions of batch 1)
    key_padding_mask = jnp.zeros((B, S), dtype=bool).at[1, S - 2:].set(True)

    fwd = jax.jit(functools.partial(transformer_encoder_layer,
                                    num_heads=H, normalize_before=False))
    out = fwd(x, key_padding_mask, params)
    jax.block_until_ready(out)
    assert out.shape == (S, B, E)
    assert bool(jnp.all(jnp.isfinite(out)))
    print("KERNEL_OK")
</pallas_src>

<mosaic_0001>
module attributes {stable_mosaic.version = 11 : i64} {
  func.func @_qkv_kernel(%arg0: i32, %arg1: i32, %arg2: memref<16x32xbf16, #tpu.memory_space<vmem>>, %arg3: memref<3x32x32xbf16, #tpu.memory_space<vmem>>, %arg4: memref<3x16x32xbf16, #tpu.memory_space<vmem>>, %arg5: memref<3x16x32xf32, #tpu.memory_space<vmem>>) attributes {dimension_semantics = [#tpu.dimension_semantics<parallel>, #tpu.dimension_semantics<arbitrary>], iteration_bounds = array<i64: 1, 1>, scalar_prefetch = 0 : i64, scratch_operands = 1 : i64, tpu.core_type = #tpu.core_type<tc>, window_params = [{transform_indices = @transform_0, window_bounds = array<i64: 16, 32>}, {transform_indices = @transform_1, window_bounds = array<i64: 3, 32, 32>}, {transform_indices = @transform_2, window_bounds = array<i64: 3, 16, 32>}]} {
    %c0_i32 = arith.constant 0 : i32
    %0 = arith.cmpi eq, %arg1, %c0_i32 : i32
    %1 = arith.extui %0 : i1 to i32
    %c0_i32_0 = arith.constant 0 : i32
    %2 = arith.cmpi ne, %1, %c0_i32_0 : i32
    scf.if %2 {
      %cst_31 = arith.constant 0.000000e+00 : f32
      %34 = vector.broadcast %cst_31 : f32 to vector<3x16x32xf32>
      %c0_32 = arith.constant 0 : index
      %c0_33 = arith.constant 0 : index
      %c0_34 = arith.constant 0 : index
      %35 = vector.load %arg5[%c0_32, %c0_33, %c0_34] : memref<3x16x32xf32, #tpu.memory_space<vmem>>, vector<3x16x32xf32>
      tpu.vector_store %arg5[%c0_32, %c0_33, %c0_34], %34 {strides = array<i32>} : memref<3x16x32xf32, #tpu.memory_space<vmem>>, vector<3x16x32xf32>,
    } else {
    }
    %c0 = arith.constant 0 : index
    %c0_1 = arith.constant 0 : index
    %3 = vector.load %arg2[%c0, %c0_1] : memref<16x32xbf16, #tpu.memory_space<vmem>>, vector<16x32xbf16>
    %c0_2 = arith.constant 0 : index
    %c0_3 = arith.constant 0 : index
    %c0_4 = arith.constant 0 : index
    %4 = vector.load %arg5[%c0_2, %c0_3, %c0_4] : memref<3x16x32xf32, #tpu.memory_space<vmem>>, vector<1x16x32xf32>
    %5 = vector.shape_cast %4 : vector<1x16x32xf32> to vector<16x32xf32>
    %c0_5 = arith.constant 0 : index
    %c0_6 = arith.constant 0 : index
    %c0_7 = arith.constant 0 : index
    %6 = vector.load %arg3[%c0_5, %c0_6, %c0_7] : memref<3x32x32xbf16, #tpu.memory_space<vmem>>, vector<1x32x32xbf16>
    %7 = vector.shape_cast %6 : vector<1x32x32xbf16> to vector<32x32xbf16>
    %cst = arith.constant dense<0.000000e+00> : vector<16x32xf32>
    %8 = tpu.matmul %3, %7, %cst {dimension_numbers = #tpu.dot_dimension_numbers<[1], [0], [0], [1], [0, 0, 1, 1], [], []>} : vector<16x32xbf16>, vector<32x32xbf16>, vector<16x32xf32> -> vector<16x32xf32>
    %9 = arith.addf %5, %8 : vector<16x32xf32>
    %c0_8 = arith.constant 0 : index
    %c0_9 = arith.constant 0 : index
    %c0_10 = arith.constant 0 : index
    %10 = vector.load %arg5[%c0_8, %c0_9, %c0_10] : memref<3x16x32xf32, #tpu.memory_space<vmem>>, vector<1x16x32xf32>
    %11 = vector.shape_cast %10 : vector<1x16x32xf32> to vector<16x32xf32>
    %12 = vector.shape_cast %9 : vector<16x32xf32> to vector<1x16x32xf32>
    tpu.vector_store %arg5[%c0_8, %c0_9, %c0_10], %12 {strides = array<i32>} : memref<3x16x32xf32, #tpu.memory_space<vmem>>, vector<1x16x32xf32>,
    %c1 = arith.constant 1 : index
    %c0_11 = arith.constant 0 : index
    %c0_12 = arith.constant 0 : index
    %13 = vector.load %arg5[%c1, %c0_11, %c0_12] : memref<3x16x32xf32, #tpu.memory_space<vmem>>, vector<1x16x32xf32>
    %14 = vector.shape_cast %13 : vector<1x16x32xf32> to vector<16x32xf32>
    %c1_13 = arith.constant 1 : index
    %c0_14 = arith.constant 0 : index
    %c0_15 = arith.constant 0 : index
    %15 = vector.load %arg3[%c1_13, %c0_14, %c0_15] : memref<3x32x32xbf16, #tpu.memory_space<vmem>>, vector<1x32x32xbf16>
    %16 = vector.shape_cast %15 : vector<1x32x32xbf16> to vector<32x32xbf16>
    %cst_16 = arith.constant dense<0.000000e+00> : vector<16x32xf32>
    %17 = tpu.matmul %3, %16, %cst_16 {dimension_numbers = #tpu.dot_dimension_numbers<[1], [0], [0], [1], [0, 0, 1, 1], [], []>} : vector<16x32xbf16>, vector<32x32xbf16>, vector<16x32xf32> -> vector<16x32xf32>
    %18 = arith.addf %14, %17 : vector<16x32xf32>
    %c1_17 = arith.constant 1 : index
    %c0_18 = arith.constant 0 : index
    %c0_19 = arith.constant 0 : index
    %19 = vector.load %arg5[%c1_17, %c0_18, %c0_19] : memref<3x16x32xf32, #tpu.memory_space<vmem>>, vector<1x16x32xf32>
    %20 = vector.shape_cast %19 : vector<1x16x32xf32> to vector<16x32xf32>
    %21 = vector.shape_cast %18 : vector<16x32xf32> to vector<1x16x32xf32>
    tpu.vector_store %arg5[%c1_17, %c0_18, %c0_19], %21 {strides = array<i32>} : memref<3x16x32xf32, #tpu.memory_space<vmem>>, vector<1x16x32xf32>,
    %c2 = arith.constant 2 : index
    %c0_20 = arith.constant 0 : index
    %c0_21 = arith.constant 0 : index
    %22 = vector.load %arg5[%c2, %c0_20, %c0_21] : memref<3x16x32xf32, #tpu.memory_space<vmem>>, vector<1x16x32xf32>
    %23 = vector.shape_cast %22 : vector<1x16x32xf32> to vector<16x32xf32>
    %c2_22 = arith.constant 2 : index
    %c0_23 = arith.constant 0 : index
    %c0_24 = arith.constant 0 : index
    %24 = vector.load %arg3[%c2_22, %c0_23, %c0_24] : memref<3x32x32xbf16, #tpu.memory_space<vmem>>, vector<1x32x32xbf16>
    %25 = vector.shape_cast %24 : vector<1x32x32xbf16> to vector<32x32xbf16>
    %cst_25 = arith.constant dense<0.000000e+00> : vector<16x32xf32>
    %26 = tpu.matmul %3, %25, %cst_25 {dimension_numbers = #tpu.dot_dimension_numbers<[1], [0], [0], [1], [0, 0, 1, 1], [], []>} : vector<16x32xbf16>, vector<32x32xbf16>, vector<16x32xf32> -> vector<16x32xf32>
    %27 = arith.addf %23, %26 : vector<16x32xf32>
    %c2_26 = arith.constant 2 : index
    %c0_27 = arith.constant 0 : index
    %c0_28 = arith.constant 0 : index
    %28 = vector.load %arg5[%c2_26, %c0_27, %c0_28] : memref<3x16x32xf32, #tpu.memory_space<vmem>>, vector<1x16x32xf32>
    %29 = vector.shape_cast %28 : vector<1x16x32xf32> to vector<16x32xf32>
    %30 = vector.shape_cast %27 : vector<16x32xf32> to vector<1x16x32xf32>
    tpu.vector_store %arg5[%c2_26, %c0_27, %c0_28], %30 {strides = array<i32>} : memref<3x16x32xf32, #tpu.memory_space<vmem>>, vector<1x16x32xf32>,
    %c0_i32_29 = arith.constant 0 : i32
    %31 = arith.cmpi eq, %arg1, %c0_i32_29 : i32
    %32 = arith.extui %31 : i1 to i32
    %c0_i32_30 = arith.constant 0 : i32
    %33 = arith.cmpi ne, %32, %c0_i32_30 : i32
    scf.if %33 {
      %c0_31 = arith.constant 0 : index
      %c0_32 = arith.constant 0 : index
      %c0_33 = arith.constant 0 : index
      %34 = vector.load %arg5[%c0_31, %c0_32, %c0_33] : memref<3x16x32xf32, #tpu.memory_space<vmem>>, vector<3x16x32xf32>
      %35 = arith.truncf %34 : vector<3x16x32xf32> to vector<3x16x32xbf16>
      %c0_34 = arith.constant 0 : index
      %c0_35 = arith.constant 0 : index
      %c0_36 = arith.constant 0 : index
      %36 = vector.load %arg4[%c0_34, %c0_35, %c0_36] : memref<3x16x32xbf16, #tpu.memory_space<vmem>>, vector<3x16x32xbf16>
      tpu.vector_store %arg4[%c0_34, %c0_35, %c0_36], %35 {strides = array<i32>} : memref<3x16x32xbf16, #tpu.memory_space<vmem>>, vector<3x16x32xbf16>,
    } else {
    }
    return
  }
  func.func @transform_0(%arg0: i32, %arg1: i32) -> (i32, i32) {
    %c0_i32 = arith.constant 0 : i32
    return %arg0, %arg1 : i32, i32
  }
  func.func @transform_1(%arg0: i32, %arg1: i32) -> (i32, i32, i32) {
    %c0_i32 = arith.constant 0 : i32
    %c0_i32_0 = arith.constant 0 : i32
    %c0_i32_1 = arith.constant 0 : i32
    return %c0_i32, %arg1, %c0_i32_0 : i32, i32, i32
  }
  func.func @transform_2(%arg0: i32, %arg1: i32) -> (i32, i32, i32) {
    %c0_i32 = arith.constant 0 : i32
    %c0_i32_0 = arith.constant 0 : i32
    %c0_i32_1 = arith.constant 0 : i32
    return %c0_i32, %arg0, %c0_i32_0 : i32, i32, i32
  }
}

module attributes {stable_mosaic.version = 11 : i64} {
  func.func @_mm_res_ln_kernel(%arg0: i32, %arg1: i32, %arg2: memref<16x32xbf16, #tpu.memory_space<vmem>>, %arg3: memref<32x32xbf16, #tpu.memory_space<vmem>>, %arg4: memref<16x32xbf16, #tpu.memory_space<vmem>>, %arg5: memref<1x32xf32, #tpu.memory_space<vmem>>, %arg6: memref<1x32xf32, #tpu.memory_space<vmem>>, %arg7: memref<16x32xbf16, #tpu.memory_space<vmem>>, %arg8: memref<16x32xf32, #tpu.memory_space<vmem>>) attributes {dimension_semantics = [#tpu.dimension_semantics<parallel>, #tpu.dimension_semantics<arbitrary>], iteration_bounds = array<i64: 1, 1>, scalar_prefetch = 0 : i64, scratch_operands = 1 : i64, tpu.core_type = #tpu.core_type<tc>, window_params = [{transform_indices = @transform_0, window_bounds = array<i64: 16, 32>}, {transform_indices = @transform_1, window_bounds = array<i64: 32, 32>}, {transform_indices = @transform_2, window_bounds = array<i64: 16, 32>}, {pipeline_mode = #tpu.pipeline_mode<synchronous>, transform_indices = @transform_3, window_bounds = array<i64: 1, 32>}, {pipeline_mode = #tpu.pipeline_mode<synchronous>, transform_indices = @transform_4, window_bounds = array<i64: 1, 32>}, {transform_indices = @transform_5, window_bounds = array<i64: 16, 32>}]} {
    %c0_i32 = arith.constant 0 : i32
    %0 = arith.cmpi eq, %arg1, %c0_i32 : i32
    %1 = arith.extui %0 : i1 to i32
    %c0_i32_0 = arith.constant 0 : i32
    %2 = arith.cmpi ne, %1, %c0_i32_0 : i32
    scf.if %2 {
      %cst_10 = arith.constant 0.000000e+00 : f32
      %12 = vector.broadcast %cst_10 : f32 to vector<16x32xf32>
      %c0_11 = arith.constant 0 : index
      %c0_12 = arith.constant 0 : index
      %13 = vector.load %arg8[%c0_11, %c0_12] : memref<16x32xf32, #tpu.memory_space<vmem>>, vector<16x32xf32>
      tpu.vector_store %arg8[%c0_11, %c0_12], %12 {strides = array<i32>} : memref<16x32xf32, #tpu.memory_space<vmem>>, vector<16x32xf32>,
    } else {
    }
    %c0 = arith.constant 0 : index
    %c0_1 = arith.constant 0 : index
    %3 = vector.load %arg8[%c0, %c0_1] : memref<16x32xf32, #tpu.memory_space<vmem>>, vector<16x32xf32>
    %c0_2 = arith.constant 0 : index
    %c0_3 = arith.constant 0 : index
    %4 = vector.load %arg2[%c0_2, %c0_3] : memref<16x32xbf16, #tpu.memory_space<vmem>>, vector<16x32xbf16>
    %c0_4 = arith.constant 0 : index
    %c0_5 = arith.constant 0 : index
    %5 = vector.load %arg3[%c0_4, %c0_5] : memref<32x32xbf16, #tpu.memory_space<vmem>>, vector<32x32xbf16>
    %cst = arith.constant dense<0.000000e+00> : vector<16x32xf32>
    %6 = tpu.matmul %4, %5, %cst {dimension_numbers = #tpu.dot_dimension_numbers<[1], [0], [0], [1], [0, 0, 1, 1], [], []>} : vector<16x32xbf16>, vector<32x32xbf16>, vector<16x32xf32> -> vector<16x32xf32>
    %7 = arith.addf %3, %6 : vector<16x32xf32>
    %c0_6 = arith.constant 0 : index
    %c0_7 = arith.constant 0 : index
    %8 = vector.load %arg8[%c0_6, %c0_7] : memref<16x32xf32, #tpu.memory_space<vmem>>, vector<16x32xf32>
    tpu.vector_store %arg8[%c0_6, %c0_7], %7 {strides = array<i32>} : memref<16x32xf32, #tpu.memory_space<vmem>>, vector<16x32xf32>,
    %c0_i32_8 = arith.constant 0 : i32
    %9 = arith.cmpi eq, %arg1, %c0_i32_8 : i32
    %10 = arith.extui %9 : i1 to i32
    %c0_i32_9 = arith.constant 0 : i32
    %11 = arith.cmpi ne, %10, %c0_i32_9 : i32
    scf.if %11 {
      %c0_10 = arith.constant 0 : index
      %c0_11 = arith.constant 0 : index
      %12 = vector.load %arg8[%c0_10, %c0_11] : memref<16x32xf32, #tpu.memory_space<vmem>>, vector<16x32xf32>
      %c0_12 = arith.constant 0 : index
      %c0_13 = arith.constant 0 : index
      %13 = vector.load %arg4[%c0_12, %c0_13] : memref<16x32xbf16, #tpu.memory_space<vmem>>, vector<16x32xbf16>
      %14 = arith.extf %13 : vector<16x32xbf16> to vector<16x32xf32>
      %15 = arith.addf %12, %14 : vector<16x32xf32>
      %cst_14 = arith.constant dense<0.000000e+00> : vector<16xf32>
      %16 = vector.multi_reduction <add>, %15, %cst_14 [1] : vector<16x32xf32> to vector<16xf32>
      %17 = vector.shape_cast %16 : vector<16xf32> to vector<16x1xf32>
      %cst_15 = arith.constant 3.200000e+01 : f32
      %18 = vector.broadcast %cst_15 : f32 to vector<16x1xf32>
      %19 = arith.divf %17, %18 : vector<16x1xf32>
      %20 = vector.broadcast %19 : vector<16x1xf32> to vector<16x32xf32>
      %21 = arith.subf %15, %20 : vector<16x32xf32>
      %22 = arith.mulf %21, %21 : vector<16x32xf32>
      %cst_16 = arith.constant dense<0.000000e+00> : vector<16xf32>
      %23 = vector.multi_reduction <add>, %22, %cst_16 [1] : vector<16x32xf32> to vector<16xf32>
      %24 = vector.shape_cast %23 : vector<16xf32> to vector<16x1xf32>
      %cst_17 = arith.constant 3.200000e+01 : f32
      %25 = vector.broadcast %cst_17 : f32 to vector<16x1xf32>
      %26 = arith.divf %24, %25 : vector<16x1xf32>
      %27 = vector.broadcast %19 : vector<16x1xf32> to vector<16x32xf32>
      %28 = arith.subf %15, %27 : vector<16x32xf32>
      %cst_18 = arith.constant 9.99999974E-6 : f32
      %29 = vector.broadcast %cst_18 : f32 to vector<16x1xf32>
      %30 = arith.addf %26, %29 : vector<16x1xf32>
      %31 = math.rsqrt %30 : vector<16x1xf32>
      %32 = vector.broadcast %31 : vector<16x1xf32> to vector<16x32xf32>
      %33 = arith.mulf %28, %32 : vector<16x32xf32>
      %c0_19 = arith.constant 0 : index
      %c0_20 = arith.constant 0 : index
      %34 = vector.load %arg5[%c0_19, %c0_20] : memref<1x32xf32, #tpu.memory_space<vmem>>, vector<1x32xf32>
      %35 = vector.broadcast %34 : vector<1x32xf32> to vector<16x32xf32>
      %36 = arith.mulf %33, %35 : vector<16x32xf32>
      %c0_21 = arith.constant 0 : index
      %c0_22 = arith.constant 0 : index
      %37 = vector.load %arg6[%c0_21, %c0_22] : memref<1x32xf32, #tpu.memory_space<vmem>>, vector<1x32xf32>
      %38 = vector.broadcast %37 : vector<1x32xf32> to vector<16x32xf32>
      %39 = arith.addf %36, %38 : vector<16x32xf32>
      %40 = arith.truncf %39 : vector<16x32xf32> to vector<16x32xbf16>
      %c0_23 = arith.constant 0 : index
      %c0_24 = arith.constant 0 : index
      %41 = vector.load %arg7[%c0_23, %c0_24] : memref<16x32xbf16, #tpu.memory_space<vmem>>, vector<16x32xbf16>
      tpu.vector_store %arg7[%c0_23, %c0_24], %40 {strides = array<i32>} : memref<16x32xbf16, #tpu.memory_space<vmem>>, vector<16x32xbf16>,
    } else {
    }
    return
  }
  func.func @transform_0(%arg0: i32, %arg1: i32) -> (i32, i32) {
    %c0_i32 = arith.constant 0 : i32
    return %arg0, %arg1 : i32, i32
  }
  func.func @transform_1(%arg0: i32, %arg1: i32) -> (i32, i32) {
    %c0_i32 = arith.constant 0 : i32
    %c0_i32_0 = arith.constant 0 : i32
    return %arg1, %c0_i32 : i32, i32
  }
  func.func @transform_2(%arg0: i32, %arg1: i32) -> (i32, i32) {
    %c0_i32 = arith.constant 0 : i32
    %c0_i32_0 = arith.constant 0 : i32
    return %arg0, %c0_i32 : i32, i32
  }
  func.func @transform_3(%arg0: i32, %arg1: i32) -> (i32, i32) {
    %c0_i32 = arith.constant 0 : i32
    %c0_i32_0 = arith.constant 0 : i32
    %c0_i32_1 = arith.constant 0 : i32
    return %c0_i32, %c0_i32_0 : i32, i32
  }
  func.func @transform_4(%arg0: i32, %arg1: i32) -> (i32, i32) {
    %c0_i32 = arith.constant 0 : i32
    %c0_i32_0 = arith.constant 0 : i32
    %c0_i32_1 = arith.constant 0 : i32
    return %c0_i32, %c0_i32_0 : i32, i32
  }
  func.func @transform_5(%arg0: i32, %arg1: i32) -> (i32, i32) {
    %c0_i32 = arith.constant 0 : i32
    %c0_i32_0 = arith.constant 0 : i32
    return %arg0, %c0_i32 : i32, i32
  }
}

module attributes {stable_mosaic.version = 11 : i64} {
  func.func @_mm_bias_relu_kernel(%arg0: i32, %arg1: i32, %arg2: i32, %arg3: memref<16x32xbf16, #tpu.memory_space<vmem>>, %arg4: memref<32x64xbf16, #tpu.memory_space<vmem>>, %arg5: memref<1x64xf32, #tpu.memory_space<vmem>>, %arg6: memref<16x64xbf16, #tpu.memory_space<vmem>>, %arg7: memref<16x64xf32, #tpu.memory_space<vmem>>) attributes {dimension_semantics = [#tpu.dimension_semantics<parallel>, #tpu.dimension_semantics<parallel>, #tpu.dimension_semantics<arbitrary>], iteration_bounds = array<i64: 1, 1, 1>, scalar_prefetch = 0 : i64, scratch_operands = 1 : i64, tpu.core_type = #tpu.core_type<tc>, window_params = [{transform_indices = @transform_0, window_bounds = array<i64: 16, 32>}, {transform_indices = @transform_1, window_bounds = array<i64: 32, 64>}, {transform_indices = @transform_2, window_bounds = array<i64: 1, 64>}, {transform_indices = @transform_3, window_bounds = array<i64: 16, 64>}]} {
    %c0_i32 = arith.constant 0 : i32
    %0 = arith.cmpi eq, %arg2, %c0_i32 : i32
    %1 = arith.extui %0 : i1 to i32
    %c0_i32_0 = arith.constant 0 : i32
    %2 = arith.cmpi ne, %1, %c0_i32_0 : i32
    scf.if %2 {
      %cst_10 = arith.constant 0.000000e+00 : f32
      %12 = vector.broadcast %cst_10 : f32 to vector<16x64xf32>
      %c0_11 = arith.constant 0 : index
      %c0_12 = arith.constant 0 : index
      %13 = vector.load %arg7[%c0_11, %c0_12] : memref<16x64xf32, #tpu.memory_space<vmem>>, vector<16x64xf32>
      tpu.vector_store %arg7[%c0_11, %c0_12], %12 {strides = array<i32>} : memref<16x64xf32, #tpu.memory_space<vmem>>, vector<16x64xf32>,
    } else {
    }
    %c0 = arith.constant 0 : index
    %c0_1 = arith.constant 0 : index
    %3 = vector.load %arg7[%c0, %c0_1] : memref<16x64xf32, #tpu.memory_space<vmem>>, vector<16x64xf32>
    %c0_2 = arith.constant 0 : index
    %c0_3 = arith.constant 0 : index
    %4 = vector.load %arg3[%c0_2, %c0_3] : memref<16x32xbf16, #tpu.memory_space<vmem>>, vector<16x32xbf16>
    %c0_4 = arith.constant 0 : index
    %c0_5 = arith.constant 0 : index
    %5 = vector.load %arg4[%c0_4, %c0_5] : memref<32x64xbf16, #tpu.memory_space<vmem>>, vector<32x64xbf16>
    %cst = arith.constant dense<0.000000e+00> : vector<16x64xf32>
    %6 = tpu.matmul %4, %5, %cst {dimension_numbers = #tpu.dot_dimension_numbers<[1], [0], [0], [1], [0, 0, 1, 1], [], []>} : vector<16x32xbf16>, vector<32x64xbf16>, vector<16x64xf32> -> vector<16x64xf32>
    %7 = arith.addf %3, %6 : vector<16x64xf32>
    %c0_6 = arith.constant 0 : index
    %c0_7 = arith.constant 0 : index
    %8 = vector.load %arg7[%c0_6, %c0_7] : memref<16x64xf32, #tpu.memory_space<vmem>>, vector<16x64xf32>
    tpu.vector_store %arg7[%c0_6, %c0_7], %7 {strides = array<i32>} : memref<16x64xf32, #tpu.memory_space<vmem>>, vector<16x64xf32>,
    %c0_i32_8 = arith.constant 0 : i32
    %9 = arith.cmpi eq, %arg2, %c0_i32_8 : i32
    %10 = arith.extui %9 : i1 to i32
    %c0_i32_9 = arith.constant 0 : i32
    %11 = arith.cmpi ne, %10, %c0_i32_9 : i32
    scf.if %11 {
      %c0_10 = arith.constant 0 : index
      %c0_11 = arith.constant 0 : index
      %12 = vector.load %arg7[%c0_10, %c0_11] : memref<16x64xf32, #tpu.memory_space<vmem>>, vector<16x64xf32>
      %c0_12 = arith.constant 0 : index
      %c0_13 = arith.constant 0 : index
      %13 = vector.load %arg5[%c0_12, %c0_13] : memref<1x64xf32, #tpu.memory_space<vmem>>, vector<1x64xf32>
      %14 = vector.broadcast %13 : vector<1x64xf32> to vector<16x64xf32>
      %15 = arith.addf %12, %14 : vector<16x64xf32>
      %cst_14 = arith.constant 0.000000e+00 : f32
      %16 = vector.broadcast %cst_14 : f32 to vector<16x64xf32>
      %17 = arith.maximumf %15, %16 : vector<16x64xf32>
      %18 = arith.truncf %17 : vector<16x64xf32> to vector<16x64xbf16>
      %c0_15 = arith.constant 0 : index
      %c0_16 = arith.constant 0 : index
      %19 = vector.load %arg6[%c0_15, %c0_16] : memref<16x64xbf16, #tpu.memory_space<vmem>>, vector<16x64xbf16>
      tpu.vector_store %arg6[%c0_15, %c0_16], %18 {strides = array<i32>} : memref<16x64xbf16, #tpu.memory_space<vmem>>, vector<16x64xbf16>,
    } else {
    }
    return
  }
  func.func @transform_0(%arg0: i32, %arg1: i32, %arg2: i32) -> (i32, i32) {
    %c0_i32 = arith.constant 0 : i32
    return %arg0, %arg2 : i32, i32
  }
  func.func @transform_1(%arg0: i32, %arg1: i32, %arg2: i32) -> (i32, i32) {
    %c0_i32 = arith.constant 0 : i32
    return %arg2, %arg1 : i32, i32
  }
  func.func @transform_2(%arg0: i32, %arg1: i32, %arg2: i32) -> (i32, i32) {
    %c0_i32 = arith.constant 0 : i32
    %c0_i32_0 = arith.constant 0 : i32
    return %c0_i32, %arg1 : i32, i32
  }
  func.func @transform_3(%arg0: i32, %arg1: i32, %arg2: i32) -> (i32, i32) {
    %c0_i32 = arith.constant 0 : i32
    return %arg0, %arg1 : i32, i32
  }
}

module attributes {stable_mosaic.version = 11 : i64} {
  func.func @_attn_kernel(%arg0: i32, %arg1: i32, %arg2: i32, %arg3: memref<1x1x8x32xbf16, #tpu.memory_space<vmem>>, %arg4: memref<1x1x8x32xbf16, #tpu.memory_space<vmem>>, %arg5: memref<1x1x8x32xbf16, #tpu.memory_space<vmem>>, %arg6: memref<1x1x8xf32, #tpu.memory_space<vmem>>, %arg7: memref<1x8x32xbf16, #tpu.memory_space<vmem>>, %arg8: memref<4x8x1xf32, #tpu.memory_space<vmem>>, %arg9: memref<4x8x1xf32, #tpu.memory_space<vmem>>, %arg10: memref<4x8x8xf32, #tpu.memory_space<vmem>>) attributes {dimension_semantics = [#tpu.dimension_semantics<parallel>, #tpu.dimension_semantics<parallel>, #tpu.dimension_semantics<arbitrary>], iteration_bounds = array<i64: 2, 1, 1>, scalar_prefetch = 0 : i64, scratch_operands = 3 : i64, tpu.core_type = #tpu.core_type<tc>, window_params = [{transform_indices = @transform_0, window_bounds = array<i64: 1, 1, 8, 32>}, {transform_indices = @transform_1, window_bounds = array<i64: 1, 1, 8, 32>}, {transform_indices = @transform_2, window_bounds = array<i64: 1, 1, 8, 32>}, {transform_indices = @transform_3, window_bounds = array<i64: 1, 1, 8>}, {transform_indices = @transform_4, window_bounds = array<i64: 1, 8, 32>}]} {
    %c0_i32 = arith.constant 0 : i32
    %0 = arith.cmpi eq, %arg2, %c0_i32 : i32
    %1 = arith.extui %0 : i1 to i32
    %c0_i32_0 = arith.constant 0 : i32
    %2 = arith.cmpi ne, %1, %c0_i32_0 : i32
    scf.if %2 {
      %cst_134 = arith.constant 0xFF800000 : f32
      %172 = vector.broadcast %cst_134 : f32 to vector<4x8x1xf32>
      %c0_135 = arith.constant 0 : index
      %c0_136 = arith.constant 0 : index
      %c0_137 = arith.constant 0 : index
      %173 = vector.load %arg8[%c0_135, %c0_136, %c0_137] : memref<4x8x1xf32, #tpu.memory_space<vmem>>, vector<4x8x1xf32>
      tpu.vector_store %arg8[%c0_135, %c0_136, %c0_137], %172 {strides = array<i32>} : memref<4x8x1xf32, #tpu.memory_space<vmem>>, vector<4x8x1xf32>,
      %cst_138 = arith.constant 0.000000e+00 : f32
      %174 = vector.broadcast %cst_138 : f32 to vector<4x8x1xf32>
      %c0_139 = arith.constant 0 : index
      %c0_140 = arith.constant 0 : index
      %c0_141 = arith.constant 0 : index
      %175 = vector.load %arg9[%c0_139, %c0_140, %c0_141] : memref<4x8x1xf32, #tpu.memory_space<vmem>>, vector<4x8x1xf32>
      tpu.vector_store %arg9[%c0_139, %c0_140, %c0_141], %174 {strides = array<i32>} : memref<4x8x1xf32, #tpu.memory_space<vmem>>, vector<4x8x1xf32>,
      %cst_142 = arith.constant 0.000000e+00 : f32
      %176 = vector.broadcast %cst_142 : f32 to vector<4x8x8xf32>
      %c0_143 = arith.constant 0 : index
      %c0_144 = arith.constant 0 : index
      %c0_145 = arith.constant 0 : index
      %177 = vector.load %arg10[%c0_143, %c0_144, %c0_145] : memref<4x8x8xf32, #tpu.memory_space<vmem>>, vector<4x8x8xf32>
      tpu.vector_store %arg10[%c0_143, %c0_144, %c0_145], %176 {strides = array<i32>} : memref<4x8x8xf32, #tpu.memory_space<vmem>>, vector<4x8x8xf32>,
    } else {
    }
    %c0 = arith.constant 0 : index
    %c0_1 = arith.constant 0 : index
    %c0_2 = arith.constant 0 : index
    %3 = vector.load %arg6[%c0, %c0_1, %c0_2] : memref<1x1x8xf32, #tpu.memory_space<vmem>>, vector<1x1x8xf32>
    %4 = vector.shape_cast %3 : vector<1x1x8xf32> to vector<1x8xf32>
    %c0_3 = arith.constant 0 : index
    %c0_4 = arith.constant 0 : index
    %c0_5 = arith.constant 0 : index
    %c0_6 = arith.constant 0 : index
    %5 = vector.load %arg3[%c0_3, %c0_4, %c0_5, %c0_6] : memref<1x1x8x32xbf16, #tpu.memory_space<vmem>>, vector<1x1x8x8xbf16>
    %6 = vector.shape_cast %5 : vector<1x1x8x8xbf16> to vector<8x8xbf16>
    %c0_7 = arith.constant 0 : index
    %c0_8 = arith.constant 0 : index
    %c0_9 = arith.constant 0 : index
    %c0_10 = arith.constant 0 : index
    %7 = vector.load %arg4[%c0_7, %c0_8, %c0_9, %c0_10] : memref<1x1x8x32xbf16, #tpu.memory_space<vmem>>, vector<1x1x8x8xbf16>
    %8 = vector.shape_cast %7 : vector<1x1x8x8xbf16> to vector<8x8xbf16>
    %c0_11 = arith.constant 0 : index
    %c0_12 = arith.constant 0 : index
    %c0_13 = arith.constant 0 : index
    %c0_14 = arith.constant 0 : index
    %9 = vector.load %arg5[%c0_11, %c0_12, %c0_13, %c0_14] : memref<1x1x8x32xbf16, #tpu.memory_space<vmem>>, vector<1x1x8x8xbf16>
    %10 = vector.shape_cast %9 : vector<1x1x8x8xbf16> to vector<8x8xbf16>
    %cst = arith.constant dense<0.000000e+00> : vector<8x8xf32>
    %11 = tpu.matmul %6, %8, %cst {dimension_numbers = #tpu.dot_dimension_numbers<[1], [1], [0], [0], [0, 0, 1, 0], [], []>} : vector<8x8xbf16>, vector<8x8xbf16>, vector<8x8xf32> -> vector<8x8xf32>
    %12 = vector.broadcast %4 : vector<1x8xf32> to vector<8x8xf32>
    %13 = arith.addf %11, %12 : vector<8x8xf32>
    %c0_15 = arith.constant 0 : index
    %c0_16 = arith.constant 0 : index
    %c0_17 = arith.constant 0 : index
    %14 = vector.load %arg8[%c0_15, %c0_16, %c0_17] : memref<4x8x1xf32, #tpu.memory_space<vmem>>, vector<1x8x1xf32>
    %15 = vector.shape_cast %14 : vector<1x8x1xf32> to vector<8x1xf32>
    %cst_18 = arith.constant dense<0xFF800000> : vector<8xf32>
    %16 = vector.multi_reduction <maximumf>, %13, %cst_18 [1] : vector<8x8xf32> to vector<8xf32>
    %17 = vector.shape_cast %16 : vector<8xf32> to vector<8x1xf32>
    %18 = arith.maximumf %15, %17 : vector<8x1xf32>
    %19 = arith.subf %15, %18 : vector<8x1xf32>
    %20 = math.exp %19 : vector<8x1xf32>
    %21 = vector.broadcast %18 : vector<8x1xf32> to vector<8x8xf32>
    %22 = arith.subf %13, %21 : vector<8x8xf32>
    %23 = math.exp %22 : vector<8x8xf32>
    %c0_19 = arith.constant 0 : index
    %c0_20 = arith.constant 0 : index
    %c0_21 = arith.constant 0 : index
    %24 = vector.load %arg9[%c0_19, %c0_20, %c0_21] : memref<4x8x1xf32, #tpu.memory_space<vmem>>, vector<1x8x1xf32>
    %25 = vector.shape_cast %24 : vector<1x8x1xf32> to vector<8x1xf32>
    %26 = arith.mulf %20, %25 : vector<8x1xf32>
    %cst_22 = arith.constant dense<0.000000e+00> : vector<8xf32>
    %27 = vector.multi_reduction <add>, %23, %cst_22 [1] : vector<8x8xf32> to vector<8xf32>
    %28 = vector.shape_cast %27 : vector<8xf32> to vector<8x1xf32>
    %29 = arith.addf %26, %28 : vector<8x1xf32>
    %c0_23 = arith.constant 0 : index
    %c0_24 = arith.constant 0 : index
    %c0_25 = arith.constant 0 : index
    %30 = vector.load %arg9[%c0_23, %c0_24, %c0_25] : memref<4x8x1xf32, #tpu.memory_space<vmem>>, vector<1x8x1xf32>
    %31 = vector.shape_cast %30 : vector<1x8x1xf32> to vector<8x1xf32>
    %32 = vector.shape_cast %29 : vector<8x1xf32> to vector<1x8x1xf32>
    tpu.vector_store %arg9[%c0_23, %c0_24, %c0_25], %32 {strides = array<i32>} : memref<4x8x1xf32, #tpu.memory_space<vmem>>, vector<1x8x1xf32>,
    %c0_26 = arith.constant 0 : index
    %c0_27 = arith.constant 0 : index
    %c0_28 = arith.constant 0 : index
    %33 = vector.load %arg10[%c0_26, %c0_27, %c0_28] : memref<4x8x8xf32, #tpu.memory_space<vmem>>, vector<1x8x8xf32>
    %34 = vector.shape_cast %33 : vector<1x8x8xf32> to vector<8x8xf32>
    %35 = vector.broadcast %20 : vector<8x1xf32> to vector<8x8xf32>
    %36 = arith.mulf %35, %34 : vector<8x8xf32>
    %37 = arith.truncf %23 : vector<8x8xf32> to vector<8x8xbf16>
    %cst_29 = arith.constant dense<0.000000e+00> : vector<8x8xf32>
    %38 = tpu.matmul %37, %10, %cst_29 {dimension_numbers = #tpu.dot_dimension_numbers<[1], [0], [0], [1], [0, 0, 1, 1], [], []>} : vector<8x8xbf16>, vector<8x8xbf16>, vector<8x8xf32> -> vector<8x8xf32>
    %39 = arith.addf %36, %38 : vector<8x8xf32>
    %c0_30 = arith.constant 0 : index
    %c0_31 = arith.constant 0 : index
    %c0_32 = arith.constant 0 : index
    %40 = vector.load %arg10[%c0_30, %c0_31, %c0_32] : memref<4x8x8xf32, #tpu.memory_space<vmem>>, vector<1x8x8xf32>
    %41 = vector.shape_cast %40 : vector<1x8x8xf32> to vector<8x8xf32>
    %42 = vector.shape_cast %39 : vector<8x8xf32> to vector<1x8x8xf32>
    tpu.vector_store %arg10[%c0_30, %c0_31, %c0_32], %42 {strides = array<i32>} : memref<4x8x8xf32, #tpu.memory_space<vmem>>, vector<1x8x8xf32>,
    %c0_33 = arith.constant 0 : index
    %c0_34 = arith.constant 0 : index
    %c0_35 = arith.constant 0 : index
    %43 = vector.load %arg8[%c0_33, %c0_34, %c0_35] : memref<4x8x1xf32, #tpu.memory_space<vmem>>, vector<1x8x1xf32>
    %44 = vector.shape_cast %43 : vector<1x8x1xf32> to vector<8x1xf32>
    %45 = vector.shape_cast %18 : vector<8x1xf32> to vector<1x8x1xf32>
    tpu.vector_store %arg8[%c0_33, %c0_34, %c0_35], %45 {strides = array<i32>} : memref<4x8x1xf32, #tpu.memory_space<vmem>>, vector<1x8x1xf32>,
    %c0_36 = arith.constant 0 : index
    %c0_37 = arith.constant 0 : index
    %c0_38 = arith.constant 0 : index
    %c8 = arith.constant 8 : index
    %46 = vector.load %arg3[%c0_36, %c0_37, %c0_38, %c8] : memref<1x1x8x32xbf16, #tpu.memory_space<vmem>>, vector<1x1x8x8xbf16>
    %47 = vector.shape_cast %46 : vector<1x1x8x8xbf16> to vector<8x8xbf16>
    %c0_39 = arith.constant 0 : index
    %c0_40 = arith.constant 0 : index
    %c0_41 = arith.constant 0 : index
    %c8_42 = arith.constant 8 : index
    %48 = vector.load %arg4[%c0_39, %c0_40, %c0_41, %c8_42] : memref<1x1x8x32xbf16, #tpu.memory_space<vmem>>, vector<1x1x8x8xbf16>
    %49 = vector.shape_cast %48 : vector<1x1x8x8xbf16> to vector<8x8xbf16>
    %c0_43 = arith.constant 0 : index
    %c0_44 = arith.constant 0 : index
    %c0_45 = arith.constant 0 : index
    %c8_46 = arith.constant 8 : index
    %50 = vector.load %arg5[%c0_43, %c0_44, %c0_45, %c8_46] : memref<1x1x8x32xbf16, #tpu.memory_space<vmem>>, vector<1x1x8x8xbf16>
    %51 = vector.shape_cast %50 : vector<1x1x8x8xbf16> to vector<8x8xbf16>
    %cst_47 = arith.constant dense<0.000000e+00> : vector<8x8xf32>
    %52 = tpu.matmul %47, %49, %cst_47 {dimension_numbers = #tpu.dot_dimension_numbers<[1], [1], [0], [0], [0, 0, 1, 0], [], []>} : vector<8x8xbf16>, vector<8x8xbf16>, vector<8x8xf32> -> vector<8x8xf32>
    %53 = vector.broadcast %4 : vector<1x8xf32> to vector<8x8xf32>
    %54 = arith.addf %52, %53 : vector<8x8xf32>
    %c1 = arith.constant 1 : index
    %c0_48 = arith.constant 0 : index
    %c0_49 = arith.constant 0 : index
    %55 = vector.load %arg8[%c1, %c0_48, %c0_49] : memref<4x8x1xf32, #tpu.memory_space<vmem>>, vector<1x8x1xf32>
    %56 = vector.shape_cast %55 : vector<1x8x1xf32> to vector<8x1xf32>
    %cst_50 = arith.constant dense<0xFF800000> : vector<8xf32>
    %57 = vector.multi_reduction <maximumf>, %54, %cst_50 [1] : vector<8x8xf32> to vector<8xf32>
    %58 = vector.shape_cast %57 : vector<8xf32> to vector<8x1xf32>
    %59 = arith.maximumf %56, %58 : vector<8x1xf32>
    %60 = arith.subf %56, %59 : vector<8x1xf32>
    %61 = math.exp %60 : vector<8x1xf32>
    %62 = vector.broadcast %59 : vector<8x1xf32> to vector<8x8xf32>
    %63 = arith.subf %54, %62 : vector<8x8xf32>
    %64 = math.exp %63 : vector<8x8xf32>
    %c1_51 = arith.constant 1 : index
    %c0_52 = arith.constant 0 : index
    %c0_53 = arith.constant 0 : index
    %65 = vector.load %arg9[%c1_51, %c0_52, %c0_53] : memref<4x8x1xf32, #tpu.memory_space<vmem>>, vector<1x8x1xf32>
    %66 = vector.shape_cast %65 : vector<1x8x1xf32> to vector<8x1xf32>
    %67 = arith.mulf %61, %66 : vector<8x1xf32>
    %cst_54 = arith.constant dense<0.000000e+00> : vector<8xf32>
    %68 = vector.multi_reduction <add>, %64, %cst_54 [1] : vector<8x8xf32> to vector<8xf32>
    %69 = vector.shape_cast %68 : vector<8xf32> to vector<8x1xf32>
    %70 = arith.addf %67, %69 : vector<8x1xf32>
    %c1_55 = arith.constant 1 : index
    %c0_56 = arith.constant 0 : index
    %c0_57 = arith.constant 0 : index
    %71 = vector.load %arg9[%c1_55, %c0_56, %c0_57] : memref<4x8x1xf32, #tpu.memory_space<vmem>>, vector<1x8x1xf32>
    %72 = vector.shape_cast %71 : vector<1x8x1xf32> to vector<8x1xf32>
    %73 = vector.shape_cast %70 : vector<8x1xf32> to vector<1x8x1xf32>
    tpu.vector_store %arg9[%c1_55, %c0_56, %c0_57], %73 {strides = array<i32>} : memref<4x8x1xf32, #tpu.memory_space<vmem>>, vector<1x8x1xf32>,
    %c1_58 = arith.constant 1 : index
    %c0_59 = arith.constant 0 : index
    %c0_60 = arith.constant 0 : index
    %74 = vector.load %arg10[%c1_58, %c0_59, %c0_60] : memref<4x8x8xf32, #tpu.memory_space<vmem>>, vector<1x8x8xf32>
    %75 = vector.shape_cast %74 : vector<1x8x8xf32> to vector<8x8xf32>
    %76 = vector.broadcast %61 : vector<8x1xf32> to vector<8x8xf32>
    %77 = arith.mulf %76, %75 : vector<8x8xf32>
    %78 = arith.truncf %64 : vector<8x8xf32> to vector<8x8xbf16>
    %cst_61 = arith.constant dense<0.000000e+00> : vector<8x8xf32>
    %79 = tpu.matmul %78, %51, %cst_61 {dimension_numbers = #tpu.dot_dimension_numbers<[1], [0], [0], [1], [0, 0, 1, 1], [], []>} : vector<8x8xbf16>, vector<8x8xbf16>, vector<8x8xf32> -> vector<8x8xf32>
    %80 = arith.addf %77, %79 : vector<8x8xf32>
    %c1_62 = arith.constant 1 : index
    %c0_63 = arith.constant 0 : index
    %c0_64 = arith.constant 0 : index
    %81 = vector.load %arg10[%c1_62, %c0_63, %c0_64] : memref<4x8x8xf32, #tpu.memory_space<vmem>>, vector<1x8x8xf32>
    %82 = vector.shape_cast %81 : vector<1x8x8xf32> to vector<8x8xf32>
    %83 = vector.shape_cast %80 : vector<8x8xf32> to vector<1x8x8xf32>
    tpu.vector_store %arg10[%c1_62, %c0_63, %c0_64], %83 {strides = array<i32>} : memref<4x8x8xf32, #tpu.memory_space<vmem>>, vector<1x8x8xf32>,
    %c1_65 = arith.constant 1 : index
    %c0_66 = arith.constant 0 : index
    %c0_67 = arith.constant 0 : index
    %84 = vector.load %arg8[%c1_65, %c0_66, %c0_67] : memref<4x8x1xf32, #tpu.memory_space<vmem>>, vector<1x8x1xf32>
    %85 = vector.shape_cast %84 : vector<1x8x1xf32> to vector<8x1xf32>
    %86 = vector.shape_cast %59 : vector<8x1xf32> to vector<1x8x1xf32>
    tpu.vector_store %arg8[%c1_65, %c0_66, %c0_67], %86 {strides = array<i32>} : memref<4x8x1xf32, #tpu.memory_space<vmem>>, vector<1x8x1xf32>,
    %c0_68 = arith.constant 0 : index
    %c0_69 = arith.constant 0 : index
    %c0_70 = arith.constant 0 : index
    %c16 = arith.constant 16 : index
    %87 = vector.load %arg3[%c0_68, %c0_69, %c0_70, %c16] : memref<1x1x8x32xbf16, #tpu.memory_space<vmem>>, vector<1x1x8x8xbf16>
    %88 = vector.shape_cast %87 : vector<1x1x8x8xbf16> to vector<8x8xbf16>
    %c0_71 = arith.constant 0 : index
    %c0_72 = arith.constant 0 : index
    %c0_73 = arith.constant 0 : index
    %c16_74 = arith.constant 16 : index
    %89 = vector.load %arg4[%c0_71, %c0_72, %c0_73, %c16_74] : memref<1x1x8x32xbf16, #tpu.memory_space<vmem>>, vector<1x1x8x8xbf16>
    %90 = vector.shape_cast %89 : vector<1x1x8x8xbf16> to vector<8x8xbf16>
    %c0_75 = arith.constant 0 : index
    %c0_76 = arith.constant 0 : index
    %c0_77 = arith.constant 0 : index
    %c16_78 = arith.constant 16 : index
    %91 = vector.load %arg5[%c0_75, %c0_76, %c0_77, %c16_78] : memref<1x1x8x32xbf16, #tpu.memory_space<vmem>>, vector<1x1x8x8xbf16>
    %92 = vector.shape_cast %91 : vector<1x1x8x8xbf16> to vector<8x8xbf16>
    %cst_79 = arith.constant dense<0.000000e+00> : vector<8x8xf32>
    %93 = tpu.matmul %88, %90, %cst_79 {dimension_numbers = #tpu.dot_dimension_numbers<[1], [1], [0], [0], [0, 0, 1, 0], [], []>} : vector<8x8xbf16>, vector<8x8xbf16>, vector<8x8xf32> -> vector<8x8xf32>
    %94 = vector.broadcast %4 : vector<1x8xf32> to vector<8x8xf32>
    %95 = arith.addf %93, %94 : vector<8x8xf32>
    %c2 = arith.constant 2 : index
    %c0_80 = arith.constant 0 : index
    %c0_81 = arith.constant 0 : index
    %96 = vector.load %arg8[%c2, %c0_80, %c0_81] : memref<4x8x1xf32, #tpu.memory_space<vmem>>, vector<1x8x1xf32>
    %97 = vector.shape_cast %96 : vector<1x8x1xf32> to vector<8x1xf32>
    %cst_82 = arith.constant dense<0xFF800000> : vector<8xf32>
    %98 = vector.multi_reduction <maximumf>, %95, %cst_82 [1] : vector<8x8xf32> to vector<8xf32>
    %99 = vector.shape_cast %98 : vector<8xf32> to vector<8x1xf32>
    %100 = arith.maximumf %97, %99 : vector<8x1xf32>
    %101 = arith.subf %97, %100 : vector<8x1xf32>
    %102 = math.exp %101 : vector<8x1xf32>
    %103 = vector.broadcast %100 : vector<8x1xf32> to vector<8x8xf32>
    %104 = arith.subf %95, %103 : vector<8x8xf32>
    %105 = math.exp %104 : vector<8x8xf32>
    %c2_83 = arith.constant 2 : index
    %c0_84 = arith.constant 0 : index
    %c0_85 = arith.constant 0 : index
    %106 = vector.load %arg9[%c2_83, %c0_84, %c0_85] : memref<4x8x1xf32, #tpu.memory_space<vmem>>, vector<1x8x1xf32>
    %107 = vector.shape_cast %106 : vector<1x8x1xf32> to vector<8x1xf32>
    %108 = arith.mulf %102, %107 : vector<8x1xf32>
    %cst_86 = arith.constant dense<0.000000e+00> : vector<8xf32>
    %109 = vector.multi_reduction <add>, %105, %cst_86 [1] : vector<8x8xf32> to vector<8xf32>
    %110 = vector.shape_cast %109 : vector<8xf32> to vector<8x1xf32>
    %111 = arith.addf %108, %110 : vector<8x1xf32>
    %c2_87 = arith.constant 2 : index
    %c0_88 = arith.constant 0 : index
    %c0_89 = arith.constant 0 : index
    %112 = vector.load %arg9[%c2_87, %c0_88, %c0_89] : memref<4x8x1xf32, #tpu.memory_space<vmem>>, vector<1x8x1xf32>
    %113 = vector.shape_cast %112 : vector<1x8x1xf32> to vector<8x1xf32>
    %114 = vector.shape_cast %111 : vector<8x1xf32> to vector<1x8x1xf32>
    tpu.vector_store %arg9[%c2_87, %c0_88, %c0_89], %114 {strides = array<i32>} : memref<4x8x1xf32, #tpu.memory_space<vmem>>, vector<1x8x1xf32>,
    %c2_90 = arith.constant 2 : index
    %c0_91 = arith.constant 0 : index
    %c0_92 = arith.constant 0 : index
    %115 = vector.load %arg10[%c2_90, %c0_91, %c0_92] : memref<4x8x8xf32, #tpu.memory_space<vmem>>, vector<1x8x8xf32>
    %116 = vector.shape_cast %115 : vector<1x8x8xf32> to vector<8x8xf32>
    %117 = vector.broadcast %102 : vector<8x1xf32> to vector<8x8xf32>
    %118 = arith.mulf %117, %116 : vector<8x8xf32>
    %119 = arith.truncf %105 : vector<8x8xf32> to vector<8x8xbf16>
    %cst_93 = arith.constant dense<0.000000e+00> : vector<8x8xf32>
    %120 = tpu.matmul %119, %92, %cst_93 {dimension_numbers = #tpu.dot_dimension_numbers<[1], [0], [0], [1], [0, 0, 1, 1], [], []>} : vector<8x8xbf16>, vector<8x8xbf16>, vector<8x8xf32> -> vector<8x8xf32>
    %121 = arith.addf %118, %120 : vector<8x8xf32>
    %c2_94 = arith.constant 2 : index
    %c0_95 = arith.constant 0 : index
    %c0_96 = arith.constant 0 : index
    %122 = vector.load %arg10[%c2_94, %c0_95, %c0_96] : memref<4x8x8xf32, #tpu.memory_space<vmem>>, vector<1x8x8xf32>
    %123 = vector.shape_cast %122 : vector<1x8x8xf32> to vector<8x8xf32>
    %124 = vector.shape_cast %121 : vector<8x8xf32> to vector<1x8x8xf32>
    tpu.vector_store %arg10[%c2_94, %c0_95, %c0_96], %124 {strides = array<i32>} : memref<4x8x8xf32, #tpu.memory_space<vmem>>, vector<1x8x8xf32>,
    %c2_97 = arith.constant 2 : index
    %c0_98 = arith.constant 0 : index
    %c0_99 = arith.constant 0 : index
    %125 = vector.load %arg8[%c2_97, %c0_98, %c0_99] : memref<4x8x1xf32, #tpu.memory_space<vmem>>, vector<1x8x1xf32>
    %126 = vector.shape_cast %125 : vector<1x8x1xf32> to vector<8x1xf32>
    %127 = vector.shape_cast %100 : vector<8x1xf32> to vector<1x8x1xf32>
    tpu.vector_store %arg8[%c2_97, %c0_98, %c0_99], %127 {strides = array<i32>} : memref<4x8x1xf32, #tpu.memory_space<vmem>>, vector<1x8x1xf32>,
    %c0_100 = arith.constant 0 : index
    %c0_101 = arith.constant 0 : index
    %c0_102 = arith.constant 0 : index
    %c24 = arith.constant 24 : index
    %128 = vector.load %arg3[%c0_100, %c0_101, %c0_102, %c24] : memref<1x1x8x32xbf16, #tpu.memory_space<vmem>>, vector<1x1x8x8xbf16>
    %129 = vector.shape_cast %128 : vector<1x1x8x8xbf16> to vector<8x8xbf16>
    %c0_103 = arith.constant 0 : index
    %c0_104 = arith.constant 0 : index
    %c0_105 = arith.constant 0 : index
    %c24_106 = arith.constant 24 : index
    %130 = vector.load %arg4[%c0_103, %c0_104, %c0_105, %c24_106] : memref<1x1x8x32xbf16, #tpu.memory_space<vmem>>, vector<1x1x8x8xbf16>
    %131 = vector.shape_cast %130 : vector<1x1x8x8xbf16> to vector<8x8xbf16>
    %c0_107 = arith.constant 0 : index
    %c0_108 = arith.constant 0 : index
    %c0_109 = arith.constant 0 : index
    %c24_110 = arith.constant 24 : index
    %132 = vector.load %arg5[%c0_107, %c0_108, %c0_109, %c24_110] : memref<1x1x8x32xbf16, #tpu.memory_space<vmem>>, vector<1x1x8x8xbf16>
    %133 = vector.shape_cast %132 : vector<1x1x8x8xbf16> to vector<8x8xbf16>
    %cst_111 = arith.constant dense<0.000000e+00> : vector<8x8xf32>
    %134 = tpu.matmul %129, %131, %cst_111 {dimension_numbers = #tpu.dot_dimension_numbers<[1], [1], [0], [0], [0, 0, 1, 0], [], []>} : vector<8x8xbf16>, vector<8x8xbf16>, vector<8x8xf32> -> vector<8x8xf32>
    %135 = vector.broadcast %4 : vector<1x8xf32> to vector<8x8xf32>
    %136 = arith.addf %134, %135 : vector<8x8xf32>
    %c3 = arith.constant 3 : index
    %c0_112 = arith.constant 0 : index
    %c0_113 = arith.constant 0 : index
    %137 = vector.load %arg8[%c3, %c0_112, %c0_113] : memref<4x8x1xf32, #tpu.memory_space<vmem>>, vector<1x8x1xf32>
    %138 = vector.shape_cast %137 : vector<1x8x1xf32> to vector<8x1xf32>
    %cst_114 = arith.constant dense<0xFF800000> : vector<8xf32>
    %139 = vector.multi_reduction <maximumf>, %136, %cst_114 [1] : vector<8x8xf32> to vector<8xf32>
    %140 = vector.shape_cast %139 : vector<8xf32> to vector<8x1xf32>
    %141 = arith.maximumf %138, %140 : vector<8x1xf32>
    %142 = arith.subf %138, %141 : vector<8x1xf32>
    %143 = math.exp %142 : vector<8x1xf32>
    %144 = vector.broadcast %141 : vector<8x1xf32> to vector<8x8xf32>
    %145 = arith.subf %136, %144 : vector<8x8xf32>
    %146 = math.exp %145 : vector<8x8xf32>
    %c3_115 = arith.constant 3 : index
    %c0_116 = arith.constant 0 : index
    %c0_117 = arith.constant 0 : index
    %147 = vector.load %arg9[%c3_115, %c0_116, %c0_117] : memref<4x8x1xf32, #tpu.memory_space<vmem>>, vector<1x8x1xf32>
    %148 = vector.shape_cast %147 : vector<1x8x1xf32> to vector<8x1xf32>
    %149 = arith.mulf %143, %148 : vector<8x1xf32>
    %cst_118 = arith.constant dense<0.000000e+00> : vector<8xf32>
    %150 = vector.multi_reduction <add>, %146, %cst_118 [1] : vector<8x8xf32> to vector<8xf32>
    %151 = vector.shape_cast %150 : vector<8xf32> to vector<8x1xf32>
    %152 = arith.addf %149, %151 : vector<8x1xf32>
    %c3_119 = arith.constant 3 : index
    %c0_120 = arith.constant 0 : index
    %c0_121 = arith.constant 0 : index
    %153 = vector.load %arg9[%c3_119, %c0_120, %c0_121] : memref<4x8x1xf32, #tpu.memory_space<vmem>>, vector<1x8x1xf32>
    %154 = vector.shape_cast %153 : vector<1x8x1xf32> to vector<8x1xf32>
    %155 = vector.shape_cast %152 : vector<8x1xf32> to vector<1x8x1xf32>
    tpu.vector_store %arg9[%c3_119, %c0_120, %c0_121], %155 {strides = array<i32>} : memref<4x8x1xf32, #tpu.memory_space<vmem>>, vector<1x8x1xf32>,
    %c3_122 = arith.constant 3 : index
    %c0_123 = arith.constant 0 : index
    %c0_124 = arith.constant 0 : index
    %156 = vector.load %arg10[%c3_122, %c0_123, %c0_124] : memref<4x8x8xf32, #tpu.memory_space<vmem>>, vector<1x8x8xf32>
    %157 = vector.shape_cast %156 : vector<1x8x8xf32> to vector<8x8xf32>
    %158 = vector.broadcast %143 : vector<8x1xf32> to vector<8x8xf32>
    %159 = arith.mulf %158, %157 : vector<8x8xf32>
    %160 = arith.truncf %146 : vector<8x8xf32> to vector<8x8xbf16>
    %cst_125 = arith.constant dense<0.000000e+00> : vector<8x8xf32>
    %161 = tpu.matmul %160, %133, %cst_125 {dimension_numbers = #tpu.dot_dimension_numbers<[1], [0], [0], [1], [0, 0, 1, 1], [], []>} : vector<8x8xbf16>, vector<8x8xbf16>, vector<8x8xf32> -> vector<8x8xf32>
    %162 = arith.addf %159, %161 : vector<8x8xf32>
    %c3_126 = arith.constant 3 : index
    %c0_127 = arith.constant 0 : index
    %c0_128 = arith.constant 0 : index
    %163 = vector.load %arg10[%c3_126, %c0_127, %c0_128] : memref<4x8x8xf32, #tpu.memory_space<vmem>>, vector<1x8x8xf32>
    %164 = vector.shape_cast %163 : vector<1x8x8xf32> to vector<8x8xf32>
    %165 = vector.shape_cast %162 : vector<8x8xf32> to vector<1x8x8xf32>
    tpu.vector_store %arg10[%c3_126, %c0_127, %c0_128], %165 {strides = array<i32>} : memref<4x8x8xf32, #tpu.memory_space<vmem>>, vector<1x8x8xf32>,
    %c3_129 = arith.constant 3 : index
    %c0_130 = arith.constant 0 : index
    %c0_131 = arith.constant 0 : index
    %166 = vector.load %arg8[%c3_129, %c0_130, %c0_131] : memref<4x8x1xf32, #tpu.memory_space<vmem>>, vector<1x8x1xf32>
    %167 = vector.shape_cast %166 : vector<1x8x1xf32> to vector<8x1xf32>
    %168 = vector.shape_cast %141 : vector<8x1xf32> to vector<1x8x1xf32>
    tpu.vector_store %arg8[%c3_129, %c0_130, %c0_131], %168 {strides = array<i32>} : memref<4x8x1xf32, #tpu.memory_space<vmem>>, vector<1x8x1xf32>,
    %c0_i32_132 = arith.constant 0 : i32
    %169 = arith.cmpi eq, %arg2, %c0_i32_132 : i32
    %170 = arith.extui %169 : i1 to i32
    %c0_i32_133 = arith.constant 0 : i32
    %171 = arith.cmpi ne, %170, %c0_i32_133 : i32
    scf.if %171 {
      %c0_134 = arith.constant 0 : index
      %c0_135 = arith.constant 0 : index
      %c0_136 = arith.constant 0 : index
      %172 = vector.load %arg10[%c0_134, %c0_135, %c0_136] : memref<4x8x8xf32, #tpu.memory_space<vmem>>, vector<1x8x8xf32>
      %173 = vector.shape_cast %172 : vector<1x8x8xf32> to vector<8x8xf32>
      %c0_137 = arith.constant 0 : index
      %c0_138 = arith.constant 0 : index
      %c0_139 = arith.constant 0 : index
      %174 = vector.load %arg9[%c0_137, %c0_138, %c0_139] : memref<4x8x1xf32, #tpu.memory_space<vmem>>, vector<1x8x1xf32>
      %175 = vector.shape_cast %174 : vector<1x8x1xf32> to vector<8x1xf32>
      %176 = tpu.reciprocal %175 {approx = true} : vector<8x1xf32> -> vector<8x1xf32>
      %177 = vector.broadcast %176 : vector<8x1xf32> to vector<8x8xf32>
      %178 = arith.mulf %173, %177 : vector<8x8xf32>
      %c1_140 = arith.constant 1 : index
      %c0_141 = arith.constant 0 : index
      %c0_142 = arith.constant 0 : index
      %179 = vector.load %arg10[%c1_140, %c0_141, %c0_142] : memref<4x8x8xf32, #tpu.memory_space<vmem>>, vector<1x8x8xf32>
      %180 = vector.shape_cast %179 : vector<1x8x8xf32> to vector<8x8xf32>
      %c1_143 = arith.constant 1 : index
      %c0_144 = arith.constant 0 : index
      %c0_145 = arith.constant 0 : index
      %181 = vector.load %arg9[%c1_143, %c0_144, %c0_145] : memref<4x8x1xf32, #tpu.memory_space<vmem>>, vector<1x8x1xf32>
      %182 = vector.shape_cast %181 : vector<1x8x1xf32> to vector<8x1xf32>
      %183 = tpu.reciprocal %182 {approx = true} : vector<8x1xf32> -> vector<8x1xf32>
      %184 = vector.broadcast %183 : vector<8x1xf32> to vector<8x8xf32>
      %185 = arith.mulf %180, %184 : vector<8x8xf32>
      %c2_146 = arith.constant 2 : index
      %c0_147 = arith.constant 0 : index
      %c0_148 = arith.constant 0 : index
      %186 = vector.load %arg10[%c2_146, %c0_147, %c0_148] : memref<4x8x8xf32, #tpu.memory_space<vmem>>, vector<1x8x8xf32>
      %187 = vector.shape_cast %186 : vector<1x8x8xf32> to vector<8x8xf32>
      %c2_149 = arith.constant 2 : index
      %c0_150 = arith.constant 0 : index
      %c0_151 = arith.constant 0 : index
      %188 = vector.load %arg9[%c2_149, %c0_150, %c0_151] : memref<4x8x1xf32, #tpu.memory_space<vmem>>, vector<1x8x1xf32>
      %189 = vector.shape_cast %188 : vector<1x8x1xf32> to vector<8x1xf32>
      %190 = tpu.reciprocal %189 {approx = true} : vector<8x1xf32> -> vector<8x1xf32>
      %191 = vector.broadcast %190 : vector<8x1xf32> to vector<8x8xf32>
      %192 = arith.mulf %187, %191 : vector<8x8xf32>
      %c3_152 = arith.constant 3 : index
      %c0_153 = arith.constant 0 : index
      %c0_154 = arith.constant 0 : index
      %193 = vector.load %arg10[%c3_152, %c0_153, %c0_154] : memref<4x8x8xf32, #tpu.memory_space<vmem>>, vector<1x8x8xf32>
      %194 = vector.shape_cast %193 : vector<1x8x8xf32> to vector<8x8xf32>
      %c3_155 = arith.constant 3 : index
      %c0_156 = arith.constant 0 : index
      %c0_157 = arith.constant 0 : index
      %195 = vector.load %arg9[%c3_155, %c0_156, %c0_157] : memref<4x8x1xf32, #tpu.memory_space<vmem>>, vector<1x8x1xf32>
      %196 = vector.shape_cast %195 : vector<1x8x1xf32> to vector<8x1xf32>
      %197 = tpu.reciprocal %196 {approx = true} : vector<8x1xf32> -> vector<8x1xf32>
      %198 = vector.broadcast %197 : vector<8x1xf32> to vector<8x8xf32>
      %199 = arith.mulf %194, %198 : vector<8x8xf32>
      %200 = tpu.concatenate %178, %185, %192, %199 in 1 : vector<8x8xf32>, vector<8x8xf32>, vector<8x8xf32>, vector<8x8xf32> -> vector<8x32xf32>
      %201 = arith.truncf %200 : vector<8x32xf32> to vector<8x32xbf16>
      %c0_158 = arith.constant 0 : index
      %c0_159 = arith.constant 0 : index
      %c0_160 = arith.constant 0 : index
      %202 = vector.load %arg7[%c0_158, %c0_159, %c0_160] : memref<1x8x32xbf16, #tpu.memory_space<vmem>>, vector<1x8x32xbf16>
      %203 = vector.shape_cast %202 : vector<1x8x32xbf16> to vector<8x32xbf16>
      %204 = vector.shape_cast %201 : vector<8x32xbf16> to vector<1x8x32xbf16>
      tpu.vector_store %arg7[%c0_158, %c0_159, %c0_160], %204 {strides = array<i32>} : memref<1x8x32xbf16, #tpu.memory_space<vmem>>, vector<1x8x32xbf16>,
    } else {
    }
    return
  }
  func.func @transform_0(%arg0: i32, %arg1: i32, %arg2: i32) -> (i32, i32, i32, i32) {
    %c0_i32 = arith.constant 0 : i32
    %c0_i32_0 = arith.constant 0 : i32
    %c0_i32_1 = arith.constant 0 : i32
    return %c0_i32, %arg0, %arg1, %c0_i32_0 : i32, i32, i32, i32
  }
  func.func @transform_1(%arg0: i32, %arg1: i32, %arg2: i32) -> (i32, i32, i32, i32) {
    %c1_i32 = arith.constant 1 : i32
    %c0_i32 = arith.constant 0 : i32
    %c0_i32_0 = arith.constant 0 : i32
    return %c1_i32, %arg0, %arg2, %c0_i32 : i32, i32, i32, i32
  }
  func.func @transform_2(%arg0: i32, %arg1: i32, %arg2: i32) -> (i32, i32, i32, i32) {
    %c2_i32 = arith.constant 2 : i32
    %c0_i32 = arith.constant 0 : i32
    %c0_i32_0 = arith.constant 0 : i32
    return %c2_i32, %arg0, %arg2, %c0_i32 : i32, i32, i32, i32
  }
  func.func @transform_3(%arg0: i32, %arg1: i32, %arg2: i32) -> (i32, i32, i32) {
    %c0_i32 = arith.constant 0 : i32
    %c0_i32_0 = arith.constant 0 : i32
    return %arg0, %c0_i32, %arg2 : i32, i32, i32
  }
  func.func @transform_4(%arg0: i32, %arg1: i32, %arg2: i32) -> (i32, i32, i32) {
    %c0_i32 = arith.constant 0 : i32
    %c0_i32_0 = arith.constant 0 : i32
    return %arg0, %arg1, %c0_i32 : i32, i32, i32
  }
}

module attributes {stable_mosaic.version = 11 : i64} {
  func.func @_mm_res_ln_kernel(%arg0: i32, %arg1: i32, %arg2: memref<16x64xbf16, #tpu.memory_space<vmem>>, %arg3: memref<64x32xbf16, #tpu.memory_space<vmem>>, %arg4: memref<1x32xf32, #tpu.memory_space<vmem>>, %arg5: memref<16x32xbf16, #tpu.memory_space<vmem>>, %arg6: memref<1x32xf32, #tpu.memory_space<vmem>>, %arg7: memref<1x32xf32, #tpu.memory_space<vmem>>, %arg8: memref<16x32xf32, #tpu.memory_space<vmem>>, %arg9: memref<16x32xf32, #tpu.memory_space<vmem>>) attributes {dimension_semantics = [#tpu.dimension_semantics<parallel>, #tpu.dimension_semantics<arbitrary>], iteration_bounds = array<i64: 1, 1>, scalar_prefetch = 0 : i64, scratch_operands = 1 : i64, tpu.core_type = #tpu.core_type<tc>, window_params = [{transform_indices = @transform_0, window_bounds = array<i64: 16, 64>}, {transform_indices = @transform_1, window_bounds = array<i64: 64, 32>}, {pipeline_mode = #tpu.pipeline_mode<synchronous>, transform_indices = @transform_2, window_bounds = array<i64: 1, 32>}, {transform_indices = @transform_3, window_bounds = array<i64: 16, 32>}, {pipeline_mode = #tpu.pipeline_mode<synchronous>, transform_indices = @transform_4, window_bounds = array<i64: 1, 32>}, {pipeline_mode = #tpu.pipeline_mode<synchronous>, transform_indices = @transform_5, window_bounds = array<i64: 1, 32>}, {transform_indices = @transform_6, window_bounds = array<i64: 16, 32>}]} {
    %c0_i32 = arith.constant 0 : i32
    %0 = arith.cmpi eq, %arg1, %c0_i32 : i32
    %1 = arith.extui %0 : i1 to i32
    %c0_i32_0 = arith.constant 0 : i32
    %2 = arith.cmpi ne, %1, %c0_i32_0 : i32
    scf.if %2 {
      %cst_10 = arith.constant 0.000000e+00 : f32
      %12 = vector.broadcast %cst_10 : f32 to vector<16x32xf32>
      %c0_11 = arith.constant 0 : index
      %c0_12 = arith.constant 0 : index
      %13 = vector.load %arg9[%c0_11, %c0_12] : memref<16x32xf32, #tpu.memory_space<vmem>>, vector<16x32xf32>
      tpu.vector_store %arg9[%c0_11, %c0_12], %12 {strides = array<i32>} : memref<16x32xf32, #tpu.memory_space<vmem>>, vector<16x32xf32>,
    } else {
    }
    %c0 = arith.constant 0 : index
    %c0_1 = arith.constant 0 : index
    %3 = vector.load %arg9[%c0, %c0_1] : memref<16x32xf32, #tpu.memory_space<vmem>>, vector<16x32xf32>
    %c0_2 = arith.constant 0 : index
    %c0_3 = arith.constant 0 : index
    %4 = vector.load %arg2[%c0_2, %c0_3] : memref<16x64xbf16, #tpu.memory_space<vmem>>, vector<16x64xbf16>
    %c0_4 = arith.constant 0 : index
    %c0_5 = arith.constant 0 : index
    %5 = vector.load %arg3[%c0_4, %c0_5] : memref<64x32xbf16, #tpu.memory_space<vmem>>, vector<64x32xbf16>
    %cst = arith.constant dense<0.000000e+00> : vector<16x32xf32>
    %6 = tpu.matmul %4, %5, %cst {dimension_numbers = #tpu.dot_dimension_numbers<[1], [0], [0], [1], [0, 0, 1, 1], [], []>} : vector<16x64xbf16>, vector<64x32xbf16>, vector<16x32xf32> -> vector<16x32xf32>
    %7 = arith.addf %3, %6 : vector<16x32xf32>
    %c0_6 = arith.constant 0 : index
    %c0_7 = arith.constant 0 : index
    %8 = vector.load %arg9[%c0_6, %c0_7] : memref<16x32xf32, #tpu.memory_space<vmem>>, vector<16x32xf32>
    tpu.vector_store %arg9[%c0_6, %c0_7], %7 {strides = array<i32>} : memref<16x32xf32, #tpu.memory_space<vmem>>, vector<16x32xf32>,
    %c0_i32_8 = arith.constant 0 : i32
    %9 = arith.cmpi eq, %arg1, %c0_i32_8 : i32
    %10 = arith.extui %9 : i1 to i32
    %c0_i32_9 = arith.constant 0 : i32
    %11 = arith.cmpi ne, %10, %c0_i32_9 : i32
    scf.if %11 {
      %c0_10 = arith.constant 0 : index
      %c0_11 = arith.constant 0 : index
      %12 = vector.load %arg9[%c0_10, %c0_11] : memref<16x32xf32, #tpu.memory_space<vmem>>, vector<16x32xf32>
      %c0_12 = arith.constant 0 : index
      %c0_13 = arith.constant 0 : index
      %13 = vector.load %arg4[%c0_12, %c0_13] : memref<1x32xf32, #tpu.memory_space<vmem>>, vector<1x32xf32>
      %14 = vector.broadcast %13 : vector<1x32xf32> to vector<16x32xf32>
      %15 = arith.addf %12, %14 : vector<16x32xf32>
      %c0_14 = arith.constant 0 : index
      %c0_15 = arith.constant 0 : index
      %16 = vector.load %arg5[%c0_14, %c0_15] : memref<16x32xbf16, #tpu.memory_space<vmem>>, vector<16x32xbf16>
      %17 = arith.extf %16 : vector<16x32xbf16> to vector<16x32xf32>
      %18 = arith.addf %15, %17 : vector<16x32xf32>
      %cst_16 = arith.constant dense<0.000000e+00> : vector<16xf32>
      %19 = vector.multi_reduction <add>, %18, %cst_16 [1] : vector<16x32xf32> to vector<16xf32>
      %20 = vector.shape_cast %19 : vector<16xf32> to vector<16x1xf32>
      %cst_17 = arith.constant 3.200000e+01 : f32
      %21 = vector.broadcast %cst_17 : f32 to vector<16x1xf32>
      %22 = arith.divf %20, %21 : vector<16x1xf32>
      %23 = vector.broadcast %22 : vector<16x1xf32> to vector<16x32xf32>
      %24 = arith.subf %18, %23 : vector<16x32xf32>
      %25 = arith.mulf %24, %24 : vector<16x32xf32>
      %cst_18 = arith.constant dense<0.000000e+00> : vector<16xf32>
      %26 = vector.multi_reduction <add>, %25, %cst_18 [1] : vector<16x32xf32> to vector<16xf32>
      %27 = vector.shape_cast %26 : vector<16xf32> to vector<16x1xf32>
      %cst_19 = arith.constant 3.200000e+01 : f32
      %28 = vector.broadcast %cst_19 : f32 to vector<16x1xf32>
      %29 = arith.divf %27, %28 : vector<16x1xf32>
      %30 = vector.broadcast %22 : vector<16x1xf32> to vector<16x32xf32>
      %31 = arith.subf %18, %30 : vector<16x32xf32>
      %cst_20 = arith.constant 9.99999974E-6 : f32
      %32 = vector.broadcast %cst_20 : f32 to vector<16x1xf32>
      %33 = arith.addf %29, %32 : vector<16x1xf32>
      %34 = math.rsqrt %33 : vector<16x1xf32>
      %35 = vector.broadcast %34 : vector<16x1xf32> to vector<16x32xf32>
      %36 = arith.mulf %31, %35 : vector<16x32xf32>
      %c0_21 = arith.constant 0 : index
      %c0_22 = arith.constant 0 : index
      %37 = vector.load %arg6[%c0_21, %c0_22] : memref<1x32xf32, #tpu.memory_space<vmem>>, vector<1x32xf32>
      %38 = vector.broadcast %37 : vector<1x32xf32> to vector<16x32xf32>
      %39 = arith.mulf %36, %38 : vector<16x32xf32>
      %c0_23 = arith.constant 0 : index
      %c0_24 = arith.constant 0 : index
      %40 = vector.load %arg7[%c0_23, %c0_24] : memref<1x32xf32, #tpu.memory_space<vmem>>, vector<1x32xf32>
      %41 = vector.broadcast %40 : vector<1x32xf32> to vector<16x32xf32>
      %42 = arith.addf %39, %41 : vector<16x32xf32>
      %c0_25 = arith.constant 0 : index
      %c0_26 = arith.constant 0 : index
      %43 = vector.load %arg8[%c0_25, %c0_26] : memref<16x32xf32, #tpu.memory_space<vmem>>, vector<16x32xf32>
      tpu.vector_store %arg8[%c0_25, %c0_26], %42 {strides = array<i32>} : memref<16x32xf32, #tpu.memory_space<vmem>>, vector<16x32xf32>,
    } else {
    }
    return
  }
  func.func @transform_0(%arg0: i32, %arg1: i32) -> (i32, i32) {
    %c0_i32 = arith.constant 0 : i32
    return %arg0, %arg1 : i32, i32
  }
  func.func @transform_1(%arg0: i32, %arg1: i32) -> (i32, i32) {
    %c0_i32 = arith.constant 0 : i32
    %c0_i32_0 = arith.constant 0 : i32
    return %arg1, %c0_i32 : i32, i32
  }
  func.func @transform_2(%arg0: i32, %arg1: i32) -> (i32, i32) {
    %c0_i32 = arith.constant 0 : i32
    %c0_i32_0 = arith.constant 0 : i32
    %c0_i32_1 = arith.constant 0 : i32
    return %c0_i32, %c0_i32_0 : i32, i32
  }
  func.func @transform_3(%arg0: i32, %arg1: i32) -> (i32, i32) {
    %c0_i32 = arith.constant 0 : i32
    %c0_i32_0 = arith.constant 0 : i32
    return %arg0, %c0_i32 : i32, i32
  }
  func.func @transform_4(%arg0: i32, %arg1: i32) -> (i32, i32) {
    %c0_i32 = arith.constant 0 : i32
    %c0_i32_0 = arith.constant 0 : i32
    %c0_i32_1 = arith.constant 0 : i32
    return %c0_i32, %c0_i32_0 : i32, i32
  }
  func.func @transform_5(%arg0: i32, %arg1: i32) -> (i32, i32) {
    %c0_i32 = arith.constant 0 : i32
    %c0_i32_0 = arith.constant 0 : i32
    %c0_i32_1 = arith.constant 0 : i32
    return %c0_i32, %c0_i32_0 : i32, i32
  }
  func.func @transform_6(%arg0: i32, %arg1: i32) -> (i32, i32) {
    %c0_i32 = arith.constant 0 : i32
    %c0_i32_0 = arith.constant 0 : i32
    return %arg0, %c0_i32 : i32, i32
  }
}

</mosaic_0001>

<llo_original>
// kernel: transformer_encoder_layer.8
$region0: #{transformer_encoder_layer.8}
  #allocation0 [shape = 'u32[]', space=smem, size = 0x4, offset = 0x4, fixed_abs, tag = 'smem constant byte address 0x4 - core index']
  #allocation1 [shape = 'u32[72,128]{1,0:T(1,128)}', space=vmem, size = 0x9000, scoped, tag = 'internal scratch']
  #allocation2 [shape = 'f32[16,64]{1,0:T(8,128)}', space=vmem, size = 0x2000, scoped, tag = 'scratch operand']
  %s0 = inlined_call_operand.vmem [shape: bf16[16,32], index: 0, kind: input, shape index: {}]
  %s1 = inlined_call_operand.vmem [shape: bf16[32,64], index: 1, kind: input, shape index: {}]
  %s2 = inlined_call_operand.vmem [shape: f32[1,64], index: 2, kind: input, shape index: {}]
  %s3 = inlined_call_operand.vmem [shape: bf16[16,64], index: 3, kind: output, shape index: {}]
  %s4 = sld [smem:[#allocation0]]
  $region30: #{transformer_encoder_layer.8} parent=0
    _
  %s6 = ssub.s32 1, %s4
  %s7 = scalar_select 0, %s6, %s4
  // Predicated region
  $region2: #{transformer_encoder_layer.8} parent=0 // pred_check
    _
  $region3: #{transformer_encoder_layer.8} parent=0 // pred_check_branch
    %9 = sbr.rel (0) target = $region5
  $region4: #{transformer_encoder_layer.8} parent=0 // pred_region
    _
  $region5: #{transformer_encoder_layer.8} parent=0 // pred_fallthru
    _
  // Predicated region
  $region6: #{transformer_encoder_layer.8} parent=0 // pred_check
    _
  $region7: #{transformer_encoder_layer.8} parent=0 // pred_check_branch
    %11 = sbr.rel (0) target = $region9
  $region8: #{transformer_encoder_layer.8} parent=0 // pred_region
    _
  $region9: #{transformer_encoder_layer.8} parent=0 // pred_fallthru
    _
  // Predicated region
  $region10: #{transformer_encoder_layer.8} parent=0 // pred_check
    _
  $region11: #{transformer_encoder_layer.8} parent=0 // pred_check_branch
    %13 = sbr.rel (0) target = $region13
  $region12: #{transformer_encoder_layer.8} parent=0 // pred_region
    _
  $region13: #{transformer_encoder_layer.8} parent=0 // pred_fallthru
    _
  %p15 = scmp.eq.s32.totalorder 0, 0
  // Predicated region
  $region14: #{transformer_encoder_layer.8} parent=0 // pred_check
    %p16 = pneg %p15
  $region15: #{transformer_encoder_layer.8} parent=0 // pred_check_branch
    %18 = sbr.rel (%p16) target = $region17
  $region16: #{transformer_encoder_layer.8} parent=0 // pred_region
    %vm19 = vcmask 523264
    %20 = vst.msk [vmem:[#allocation2] sm:$0xff] %vm19, 0.0
    %21 = vst.msk [vmem:[#allocation2 + $0x8] sm:$0xff] %vm19, 0.0
  $region17: #{transformer_encoder_layer.8} parent=0 // pred_fallthru
    _
  %v22 = vld [vmem:[#allocation2] sm:$0xff]
  %v23 = vld [vmem:[#allocation2 + $0x8] sm:$0xff]
  %v24 = vld [vmem:[%s0] sm:$0xf]
  %v25 = vld [vmem:[%s0 + $0x4] sm:$0xf]
  %v26 = vld [vmem:[%s1] sm:$0xf]
  %v27 = vld [vmem:[%s1 + $0x4] sm:$0xf]
  %v28 = vld [vmem:[%s1 + $0x8] sm:$0xf]
  %v29 = vld [vmem:[%s1 + $0xc] sm:$0xf]
  %v32 = vunpack.c.l.b16 %v24
  %v33 = vunpack.c.l.b16 %v25
  %v34 = vpack.c.b16 %v33, %v32
  %v39 = vunpack.c.l.b16 %v26
  %v40 = vunpack.c.l.b16 %v27
  %v41 = vunpack.c.l.b16 %v28
  %v42 = vunpack.c.l.b16 %v29
  %v43 = vpack.c.b16 %v40, %v39
  %v44 = vpack.c.b16 %v42, %v41
  %vm47 = vcmask 261120
  %v49 = vsel %vm47, %v34, 0
  %51 = vmatpush.bf16.msra.mxu0 0
  %52 = vmatpush.bf16.msra.mxu0 0
  %53 = vmatpush.bf16.msra.mxu0 0
  %54 = vmatpush.bf16.msra.mxu0 0
  %55 = vmatpush.bf16.msra.mxu0 0
  %56 = vmatpush.bf16.msra.mxu0 0
  %57 = vmatpush.bf16.msra.mxu0 %v44
  %58 = vmatpush.bf16.msra.mxu0 %v43
  %59 = vmatmul.bf16.gmra.mxu0 %v49
  %v60 = vpop.f32.mrf.mxu0
  %v61 = vadd.f32 0.0, %v60
  %v62 = vpop.f32.mrf.mxu0
  %v63 = vadd.f32 0.0, %v62
  %64 = vdwg.mxu0
  %v65 = vadd.f32 %v22, %v61
  %v66 = vadd.f32 %v23, %v63
  %vm67 = vcmask 523264
  %68 = vst.msk [vmem:[#allocation2] sm:$0xff] %vm67, %v65
  %69 = vst.msk [vmem:[#allocation2 + $0x8] sm:$0xff] %vm67, %v66
  // Predicated region
  $region18: #{transformer_encoder_layer.8} parent=0 // pred_check
    %p70 = pneg %p15
  $region19: #{transformer_encoder_layer.8} parent=0 // pred_check_branch
    %72 = sbr.rel (%p70) target = $region21
  $region20: #{transformer_encoder_layer.8} parent=0 // pred_region
    %v73 = vld [vmem:[#allocation2] sm:$0xff]
    %v74 = vld [vmem:[#allocation2 + $0x8] sm:$0xff]
    %v75 = vld [vmem:[%s2] sm:$0x1]
    %v77 = vperm.slane %v75, 0
    %v79 = vadd.f32 %v73, %v77
    %v80 = vadd.f32 %v74, %v77
    %v81 = vmax.f32 %v79, 0.0
    %v82 = vmax.f32 %v80, 0.0
    %v83 = vpack.c.bf16 %v81, %v81
    %v84 = vpack.c.bf16 %v82, %v82
    %vm85 = vcmask 519168
    %86 = vst.msk [vmem:[%s3] sm:$0xf] %vm85, %v83
    %87 = vst.msk [vmem:[%s3 + $0x4] sm:$0xf] %vm85, %v84
  $region21: #{transformer_encoder_layer.8} parent=0 // pred_fallthru
    _
  // Predicated region
  $region22: #{transformer_encoder_layer.8} parent=0 // pred_check
    _
  $region23: #{transformer_encoder_layer.8} parent=0 // pred_check_branch
    %89 = sbr.rel (0) target = $region25
  $region24: #{transformer_encoder_layer.8} parent=0 // pred_region
    _
  $region25: #{transformer_encoder_layer.8} parent=0 // pred_fallthru
    _
  // Predicated region
  $region26: #{transformer_encoder_layer.8} parent=0 // pred_check
    _
  $region27: #{transformer_encoder_layer.8} parent=0 // pred_check_branch
    %91 = sbr.rel (0) target = $region29
  $region28: #{transformer_encoder_layer.8} parent=0 // pred_region
    _
  $region29: #{transformer_encoder_layer.8} parent=0 // pred_fallthru
    _

// kernel: transformer_encoder_layer.7
$region0: #{transformer_encoder_layer.7}
  #allocation0 [shape = 'u32[]', space=smem, size = 0x4, offset = 0x4, fixed_abs, tag = 'smem constant byte address 0x4 - core index']
  #allocation1 [shape = 'u32[72,128]{1,0:T(1,128)}', space=vmem, size = 0x9000, scoped, tag = 'internal scratch']
  #allocation2 [shape = 'f32[16,32]{1,0:T(8,128)}', space=vmem, size = 0x2000, scoped, tag = 'scratch operand']
  %s0 = inlined_call_operand.vmem [shape: bf16[16,32], index: 0, kind: input, shape index: {}]
  %s1 = inlined_call_operand.vmem [shape: bf16[32,32], index: 1, kind: input, shape index: {}]
  %s2 = inlined_call_operand.vmem [shape: bf16[16,32], index: 2, kind: input, shape index: {}]
  %s3 = inlined_call_operand.vmem [shape: f32[1,32], index: 3, kind: input, shape index: {}]
  %s4 = inlined_call_operand.vmem [shape: f32[1,32], index: 4, kind: input, shape index: {}]
  %s5 = inlined_call_operand.vmem [shape: bf16[16,32], index: 5, kind: output, shape index: {}]
  %s6 = sld [smem:[#allocation0]]
  $region38: #{transformer_encoder_layer.7} parent=0
    _
  %s8 = ssub.s32 1, %s6
  %s9 = scalar_select 0, %s8, %s6
  // Predicated region
  $region2: #{transformer_encoder_layer.7} parent=0 // pred_check
    _
  $region3: #{transformer_encoder_layer.7} parent=0 // pred_check_branch
    %11 = sbr.rel (0) target = $region5
  $region4: #{transformer_encoder_layer.7} parent=0 // pred_region
    _
  $region5: #{transformer_encoder_layer.7} parent=0 // pred_fallthru
    _
  // Predicated region
  $region6: #{transformer_encoder_layer.7} parent=0 // pred_check
    _
  $region7: #{transformer_encoder_layer.7} parent=0 // pred_check_branch
    %13 = sbr.rel (0) target = $region9
  $region8: #{transformer_encoder_layer.7} parent=0 // pred_region
    _
  $region9: #{transformer_encoder_layer.7} parent=0 // pred_fallthru
    _
  // Predicated region
  $region10: #{transformer_encoder_layer.7} parent=0 // pred_check
    _
  $region11: #{transformer_encoder_layer.7} parent=0 // pred_check_branch
    %15 = sbr.rel (0) target = $region13
  $region12: #{transformer_encoder_layer.7} parent=0 // pred_region
    _
  $region13: #{transformer_encoder_layer.7} parent=0 // pred_fallthru
    _
  // Predicated region
  $region14: #{transformer_encoder_layer.7} parent=0 // pred_check
    _
  $region15: #{transformer_encoder_layer.7} parent=0 // pred_check_branch
    %17 = sbr.rel (0) target = $region17
  $region16: #{transformer_encoder_layer.7} parent=0 // pred_region
    _
  $region17: #{transformer_encoder_layer.7} parent=0 // pred_fallthru
    _
  // Predicated region
  $region18: #{transformer_encoder_layer.7} parent=0 // pred_check
    _
  $region19: #{transformer_encoder_layer.7} parent=0 // pred_check_branch
    %19 = sbr.rel (0) target = $region21
  $region20: #{transformer_encoder_layer.7} parent=0 // pred_region
    _
  $region21: #{transformer_encoder_layer.7} parent=0 // pred_fallthru
    _
  %p21 = scmp.eq.s32.totalorder 0, 0
  // Predicated region
  $region22: #{transformer_encoder_layer.7} parent=0 // pred_check
    %p22 = pneg %p21
  $region23: #{transformer_encoder_layer.7} parent=0 // pred_check_branch
    %24 = sbr.rel (%p22) target = $region25
  $region24: #{transformer_encoder_layer.7} parent=0 // pred_region
    %vm25 = vcmask 261120
    %26 = vst.msk [vmem:[#allocation2] sm:$0xff] %vm25, 0.0
    %27 = vst.msk [vmem:[#allocation2 + $0x8] sm:$0xff] %vm25, 0.0
  $region25: #{transformer_encoder_layer.7} parent=0 // pred_fallthru
    _
  %v28 = vld [vmem:[#allocation2] sm:$0xff]
  %v29 = vld [vmem:[#allocation2 + $0x8] sm:$0xff]
  %v30 = vld [vmem:[%s0] sm:$0xf]
  %v31 = vld [vmem:[%s0 + $0x4] sm:$0xf]
  %v32 = vld [vmem:[%s1] sm:$0xf]
  %v33 = vld [vmem:[%s1 + $0x4] sm:$0xf]
  %v34 = vld [vmem:[%s1 + $0x8] sm:$0xf]
  %v35 = vld [vmem:[%s1 + $0xc] sm:$0xf]
  %v38 = vunpack.c.l.b16 %v30
  %v39 = vunpack.c.l.b16 %v31
  %v40 = vpack.c.b16 %v39, %v38
  %v45 = vunpack.c.l.b16 %v32
  %v46 = vunpack.c.l.b16 %v33
  %v47 = vunpack.c.l.b16 %v34
  %v48 = vunpack.c.l.b16 %v35
  %v49 = vpack.c.b16 %v46, %v45
  %v50 = vpack.c.b16 %v48, %v47
  %vm53 = vcmask 261120
  %v55 = vsel %vm53, %v40, 0
  %57 = vmatpush.bf16.msra.mxu0 0
  %58 = vmatpush.bf16.msra.mxu0 0
  %59 = vmatpush.bf16.msra.mxu0 0
  %60 = vmatpush.bf16.msra.mxu0 0
  %61 = vmatpush.bf16.msra.mxu0 0
  %62 = vmatpush.bf16.msra.mxu0 0
  %63 = vmatpush.bf16.msra.mxu0 %v50
  %64 = vmatpush.bf16.msra.mxu0 %v49
  %65 = vmatmul.bf16.gmra.mxu0 %v55
  %v66 = vpop.f32.mrf.mxu0
  %v67 = vadd.f32 0.0, %v66
  %v68 = vpop.f32.mrf.mxu0
  %v69 = vadd.f32 0.0, %v68
  %70 = vdwg.mxu0
  %v71 = vadd.f32 %v28, %v67
  %v72 = vadd.f32 %v29, %v69
  %73 = vst.msk [vmem:[#allocation2] sm:$0xff] %vm53, %v71
  %74 = vst.msk [vmem:[#allocation2 + $0x8] sm:$0xff] %vm53, %v72
  // Predicated region
  $region26: #{transformer_encoder_layer.7} parent=0 // pred_check
    %p75 = pneg %p21
  $region27: #{transformer_encoder_layer.7} parent=0 // pred_check_branch
    %77 = sbr.rel (%p75) target = $region29
  $region28: #{transformer_encoder_layer.7} parent=0 // pred_region
    %v78 = vld [vmem:[#allocation2] sm:$0xff]
    %v79 = vld [vmem:[#allocation2 + $0x8] sm:$0xff]
    %v80 = vld [vmem:[%s2] sm:$0xf]
    %v81 = vld [vmem:[%s2 + $0x4] sm:$0xf]
    %v82 = vunpack.c.l.bf16 %v80
    %v83 = vunpack.c.l.bf16 %v81
    %v84 = vadd.f32 %v78, %v82
    %v85 = vadd.f32 %v79, %v83
    %v86 = vsel %vm53, %v84, 0.0
    %87 = vadd.xlane.f32.xlu0 %v86
    %v88 = vpop.xlane.xlu0 %87
    %v89 = vsel %vm53, %v85, 0.0
    %90 = vadd.xlane.f32.xlu0 %v89
    %v91 = vpop.xlane.xlu0 %90
    %v92 = vrcp.pop 32.0
    %v93 = vmul.f32 32.0, %v92
    %v94 = vsub.f32 1.0, %v93
    %v95 = vmul.f32 %v92, %v94
    %v96 = vadd.f32 %v92, %v95
    %vm97 = vweird.f32 %v92
    %v98 = vsel %vm97, %v92, %v96
    %v99 = vmul.f32 %v88, %v98
    %v100 = vmul.f32 %v91, %v98
    %v101 = vsub.f32 %v84, %v99
    %v102 = vsub.f32 %v85, %v100
    %v103 = vmul.f32 %v101, %v101
    %v104 = vmul.f32 %v102, %v102
    %v105 = vsel %vm53, %v103, 0.0
    %106 = vadd.xlane.f32.xlu0 %v105
    %v107 = vpop.xlane.xlu0 %106
    %v108 = vsel %vm53, %v104, 0.0
    %109 = vadd.xlane.f32.xlu0 %v108
    %v110 = vpop.xlane.xlu0 %109
    %v111 = vmul.f32 %v107, %v98
    %v112 = vmul.f32 %v110, %v98
    %v113 = vadd.f32 %v111, 1e-05
    %v114 = vadd.f32 %v112, 1e-05
    %v115 = vrsqrt.pop %v113
    %v116 = vmul.f32 %v115, %v113
    %v117 = vmul.f32 %v116, %v115
    %v118 = vmul.f32 0.5, %v117
    %v119 = vsub.f32 1.5, %v118
    %v120 = vmul.f32 %v115, %v119
    %vm121 = vweird.f32 %v113
    %vm122 = vweird.f32 %v115
    %vm123 = vmor %vm121, %vm122
    %v124 = vsel %vm123, %v115, %v120
    %v125 = vrsqrt.pop %v114
    %v126 = vmul.f32 %v125, %v114
    %v127 = vmul.f32 %v126, %v125
    %v128 = vmul.f32 0.5, %v127
    %v129 = vsub.f32 1.5, %v128
    %v130 = vmul.f32 %v125, %v129
    %vm131 = vweird.f32 %v114
    %vm132 = vweird.f32 %v125
    %vm133 = vmor %vm131, %vm132
    %v134 = vsel %vm133, %v125, %v130
    %v135 = vmul.f32 %v101, %v124
    %v136 = vmul.f32 %v102, %v134
    %v137 = vld [vmem:[%s3] sm:$0x1]
    %v139 = vperm.slane %v137, 0
    %v141 = vmul.f32 %v135, %v139
    %v142 = vmul.f32 %v136, %v139
    %v143 = vld [vmem:[%s4] sm:$0x1]
    %v145 = vperm.slane %v143, 0
    %v147 = vadd.f32 %v141, %v145
    %v148 = vadd.f32 %v142, %v145
    %v149 = vpack.c.bf16 %v147, %v147
    %v150 = vpack.c.bf16 %v148, %v148
    %vm151 = vcmask 257024
    %152 = vst.msk [vmem:[%s5] sm:$0xf] %vm151, %v149
    %153 = vst.msk [vmem:[%s5 + $0x4] sm:$0xf] %vm151, %v150
  $region29: #{transformer_encoder_layer.7} parent=0 // pred_fallthru
    _
  // Predicated region
  $region30: #{transformer_encoder_layer.7} parent=0 // pred_check
    _
  $region31: #{transformer_encoder_layer.7} parent=0 // pred_check_branch
    %155 = sbr.rel (0) target = $region33
  $region32: #{transformer_encoder_layer.7} parent=0 // pred_region
    _
  $region33: #{transformer_encoder_layer.7} parent=0 // pred_fallthru
    _
  // Predicated region
  $region34: #{transformer_encoder_layer.7} parent=0 // pred_check
    _
  $region35: #{transformer_encoder_layer.7} parent=0 // pred_check_branch
    %157 = sbr.rel (0) target = $region37
  $region36: #{transformer_encoder_layer.7} parent=0 // pred_region
    _
  $region37: #{transformer_encoder_layer.7} parent=0 // pred_fallthru
    _

// kernel: transformer_encoder_layer.5
$region0: #{transformer_encoder_layer.5}
  #allocation0 [shape = 'u32[]', space=smem, size = 0x4, offset = 0x4, fixed_abs, tag = 'smem constant byte address 0x4 - core index']
  #allocation1 [shape = 'u32[72,128]{1,0:T(1,128)}', space=vmem, size = 0x9000, scoped, tag = 'internal scratch']
  #allocation2 [shape = 'f32[3,16,32]{2,1,0:T(8,128)}', space=vmem, size = 0x6000, scoped, tag = 'scratch operand']
  %s0 = inlined_call_operand.vmem [shape: bf16[16,32], index: 0, kind: input, shape index: {}]
  %s1 = inlined_call_operand.hbm [shape: bf16[3,32,32], index: 1, kind: input, shape index: {}]
  %s2 = inlined_call_operand.vmem [shape: bf16[3,16,32], index: 2, kind: output, shape index: {}]
  %s3 = sld [smem:[#allocation0]]
  $region30: #{transformer_encoder_layer.5} parent=0
    _
  %s5 = ssub.s32 1, %s3
  %s6 = scalar_select 0, %s5, %s3
  $region1: #{transformer_encoder_layer.5} parent=0
    #allocation3 [shape = 'u8[24576]{0}', space=vmem, size = 0x6000, scoped, tag = 'input window, operand 1, single buffered']
    #allocation4 [shape = 's32[1]{0}', space=sflag, size = 0x4, scoped, tag = 'scoped memory for transformer_encoder_layer.5']
    %7 = vsyncpa [#allocation4], 0
    // Predicated region
    $region2: #{transformer_encoder_layer.5} parent=1 // pred_check
      _
    $region3: #{transformer_encoder_layer.5} parent=1 // pred_check_branch
      %9 = sbr.rel (0) target = $region5
    $region4: #{transformer_encoder_layer.5} parent=1 // pred_region
      _
    $region5: #{transformer_encoder_layer.5} parent=1 // pred_fallthru
      _
    // Predicated region
    $region6: #{transformer_encoder_layer.5} parent=1 // pred_check
      _
    $region7: #{transformer_encoder_layer.5} parent=1 // pred_check_branch
      %11 = sbr.rel (0) target = $region9
    $region8: #{transformer_encoder_layer.5} parent=1 // pred_region
      %13 = vsyncadd [#allocation4], 0
      %s14 = sshll.u32 %s1, 4
      %s15 = int_to_ptr.hbm [resolvable:$true] %s14
      %s16 = sshll.u32 [#allocation3], 4
      %s17 = int_to_ptr.vmem [resolvable:$true] %s16
      %22 = dma.hbm_to_vmem [thread:$0]  %s15, 768, %s17, [#allocation4], 64, 64, 4
    $region9: #{transformer_encoder_layer.5} parent=1 // pred_fallthru
      _
    // Predicated region
    $region10: #{transformer_encoder_layer.5} parent=1 // pred_check
      _
    $region11: #{transformer_encoder_layer.5} parent=1 // pred_check_branch
      %24 = sbr.rel (0) target = $region13
    $region12: #{transformer_encoder_layer.5} parent=1 // pred_region
      %26 = dma.done [#allocation4], 768
    $region13: #{transformer_encoder_layer.5} parent=1 // pred_fallthru
      _
    %p28 = scmp.eq.s32.totalorder 0, 0
    // Predicated region
    $region14: #{transformer_encoder_layer.5} parent=1 // pred_check
      %p29 = pneg %p28
    $region15: #{transformer_encoder_layer.5} parent=1 // pred_check_branch
      %31 = sbr.rel (%p29) target = $region17
    $region16: #{transformer_encoder_layer.5} parent=1 // pred_region
      %vm32 = vcmask 261120
      %33 = vst.msk [vmem:[#allocation2] sm:$0xff] %vm32, 0.0
      %34 = vst.msk [vmem:[#allocation2 + $0x8] sm:$0xff] %vm32, 0.0
      %35 = vst.msk [vmem:[#allocation2 + $0x10] sm:$0xff] %vm32, 0.0
      %36 = vst.msk [vmem:[#allocation2 + $0x18] sm:$0xff] %vm32, 0.0
      %37 = vst.msk [vmem:[#allocation2 + $0x20] sm:$0xff] %vm32, 0.0
      %38 = vst.msk [vmem:[#allocation2 + $0x28] sm:$0xff] %vm32, 0.0
    $region17: #{transformer_encoder_layer.5} parent=1 // pred_fallthru
      _
    %v39 = vld [vmem:[%s0] sm:$0xf]
    %v40 = vld [vmem:[%s0 + $0x4] sm:$0xf]
    %v41 = vld [vmem:[#allocation2] sm:$0xff]
    %v42 = vld [vmem:[#allocation2 + $0x8] sm:$0xff]
    %v43 = vld [vmem:[#allocation3] sm:$0xf]
    %v44 = vld [vmem:[#allocation3 + $0x4] sm:$0xf]
    %v45 = vld [vmem:[#allocation3 + $0x8] sm:$0xf]
    %v46 = vld [vmem:[#allocation3 + $0xc] sm:$0xf]
    %v49 = vunpack.c.l.b16 %v39
    %v50 = vunpack.c.l.b16 %v40
    %v51 = vpack.c.b16 %v50, %v49
    %v56 = vunpack.c.l.b16 %v43
    %v57 = vunpack.c.l.b16 %v44
    %v58 = vunpack.c.l.b16 %v45
    %v59 = vunpack.c.l.b16 %v46
    %v60 = vpack.c.b16 %v57, %v56
    %v61 = vpack.c.b16 %v59, %v58
    %vm64 = vcmask 261120
    %v66 = vsel %vm64, %v51, 0
    %68 = vmatpush.bf16.msra.mxu0 0
    %69 = vmatpush.bf16.msra.mxu0 0
    %70 = vmatpush.bf16.msra.mxu0 0
    %71 = vmatpush.bf16.msra.mxu0 0
    %72 = vmatpush.bf16.msra.mxu0 0
    %73 = vmatpush.bf16.msra.mxu0 0
    %74 = vmatpush.bf16.msra.mxu0 %v61
    %75 = vmatpush.bf16.msra.mxu0 %v60
    %76 = vmatmul.bf16.gmra.mxu0 %v66
    %v77 = vpop.f32.mrf.mxu0
    %v78 = vadd.f32 0.0, %v77
    %v79 = vpop.f32.mrf.mxu0
    %v80 = vadd.f32 0.0, %v79
    %81 = vdwg.mxu0
    %v82 = vadd.f32 %v41, %v78
    %v83 = vadd.f32 %v42, %v80
    %84 = vst.msk [vmem:[#allocation2] sm:$0xff] %vm64, %v82
    %85 = vst.msk [vmem:[#allocation2 + $0x8] sm:$0xff] %vm64, %v83
    %s86 = scalar_lea.vmem [#allocation2], 16
    %v87 = vld [vmem:[%s86] sm:$0xff]
    %v88 = vld [vmem:[%s86 + $0x8] sm:$0xff]
    %s89 = scalar_lea.vmem [#allocation3], 16
    %v90 = vld [vmem:[%s89] sm:$0xf]
    %v91 = vld [vmem:[%s89 + $0x4] sm:$0xf]
    %v92 = vld [vmem:[%s89 + $0x8] sm:$0xf]
    %v93 = vld [vmem:[%s89 + $0xc] sm:$0xf]
    %v98 = vunpack.c.l.b16 %v90
    %v99 = vunpack.c.l.b16 %v91
    %v100 = vunpack.c.l.b16 %v92
    %v101 = vunpack.c.l.b16 %v93
    %v102 = vpack.c.b16 %v99, %v98
    %v103 = vpack.c.b16 %v101, %v100
    %106 = vmatpush.bf16.msra.mxu0 0
    %107 = vmatpush.bf16.msra.mxu0 0
    %108 = vmatpush.bf16.msra.mxu0 0
    %109 = vmatpush.bf16.msra.mxu0 0
    %110 = vmatpush.bf16.msra.mxu0 0
    %111 = vmatpush.bf16.msra.mxu0 0
    %112 = vmatpush.bf16.msra.mxu0 %v103
    %113 = vmatpush.bf16.msra.mxu0 %v102
    %114 = vmatmul.bf16.gmra.mxu0 %v66
    %v115 = vpop.f32.mrf.mxu0
    %v116 = vadd.f32 0.0, %v115
    %v117 = vpop.f32.mrf.mxu0
    %v118 = vadd.f32 0.0, %v117
    %119 = vdwg.mxu0
    %v120 = vadd.f32 %v87, %v116
    %v121 = vadd.f32 %v88, %v118
    %122 = vst.msk [vmem:[%s86] sm:$0xff] %vm64, %v120
    %123 = vst.msk [vmem:[%s86 + $0x8] sm:$0xff] %vm64, %v121
    %s124 = scalar_lea.vmem [#allocation2], 32
    %v125 = vld [vmem:[%s124] sm:$0xff]
    %v126 = vld [vmem:[%s124 + $0x8] sm:$0xff]
    %s127 = scalar_lea.vmem [#allocation3], 32
    %v128 = vld [vmem:[%s127] sm:$0xf]
    %v129 = vld [vmem:[%s127 + $0x4] sm:$0xf]
    %v130 = vld [vmem:[%s127 + $0x8] sm:$0xf]
    %v131 = vld [vmem:[%s127 + $0xc] sm:$0xf]
    %v136 = vunpack.c.l.b16 %v128
    %v137 = vunpack.c.l.b16 %v129
    %v138 = vunpack.c.l.b16 %v130
    %v139 = vunpack.c.l.b16 %v131
    %v140 = vpack.c.b16 %v137, %v136
    %v141 = vpack.c.b16 %v139, %v138
    %144 = vmatpush.bf16.msra.mxu0 0
    %145 = vmatpush.bf16.msra.mxu0 0
    %146 = vmatpush.bf16.msra.mxu0 0
    %147 = vmatpush.bf16.msra.mxu0 0
    %148 = vmatpush.bf16.msra.mxu0 0
    %149 = vmatpush.bf16.msra.mxu0 0
    %150 = vmatpush.bf16.msra.mxu0 %v141
    %151 = vmatpush.bf16.msra.mxu0 %v140
    %152 = vmatmul.bf16.gmra.mxu0 %v66
    %v153 = vpop.f32.mrf.mxu0
    %v154 = vadd.f32 0.0, %v153
    %v155 = vpop.f32.mrf.mxu0
    %v156 = vadd.f32 0.0, %v155
    %157 = vdwg.mxu0
    %v158 = vadd.f32 %v125, %v154
    %v159 = vadd.f32 %v126, %v156
    %160 = vst.msk [vmem:[%s124] sm:$0xff] %vm64, %v158
    %161 = vst.msk [vmem:[%s124 + $0x8] sm:$0xff] %vm64, %v159
    // Predicated region
    $region18: #{transformer_encoder_layer.5} parent=1 // pred_check
      %p162 = pneg %p28
    $region19: #{transformer_encoder_layer.5} parent=1 // pred_check_branch
      %164 = sbr.rel (%p162) target = $region21
    $region20: #{transformer_encoder_layer.5} parent=1 // pred_region
      %v165 = vld [vmem:[#allocation2] sm:$0xff]
      %v166 = vld [vmem:[#allocation2 + $0x8] sm:$0xff]
      %v167 = vld [vmem:[#allocation2 + $0x10] sm:$0xff]
      %v168 = vld [vmem:[#allocation2 + $0x18] sm:$0xff]
      %v169 = vld [vmem:[#allocation2 + $0x20] sm:$0xff]
      %v170 = vld [vmem:[#allocation2 + $0x28] sm:$0xff]
      %v171 = vpack.c.bf16 %v165, %v165
      %v172 = vpack.c.bf16 %v166, %v166
      %v173 = vpack.c.bf16 %v167, %v167
      %v174 = vpack.c.bf16 %v168, %v168
      %v175 = vpack.c.bf16 %v169, %v169
      %v176 = vpack.c.bf16 %v170, %v170
      %vm177 = vcmask 257024
      %178 = vst.msk [vmem:[%s2] sm:$0xf] %vm177, %v171
      %179 = vst.msk [vmem:[%s2 + $0x4] sm:$0xf] %vm177, %v172
      %180 = vst.msk [vmem:[%s2 + $0x8] sm:$0xf] %vm177, %v173
      %181 = vst.msk [vmem:[%s2 + $0xc] sm:$0xf] %vm177, %v174
      %182 = vst.msk [vmem:[%s2 + $0x10] sm:$0xf] %vm177, %v175
      %183 = vst.msk [vmem:[%s2 + $0x14] sm:$0xf] %vm177, %v176
    $region21: #{transformer_encoder_layer.5} parent=1 // pred_fallthru
      _
    // Predicated region
    $region22: #{transformer_encoder_layer.5} parent=1 // pred_check
      _
    $region23: #{transformer_encoder_layer.5} parent=1 // pred_check_branch
      %185 = sbr.rel (0) target = $region25
    $region24: #{transformer_encoder_layer.5} parent=1 // pred_region
      _
    $region25: #{transformer_encoder_layer.5} parent=1 // pred_fallthru
      _
    // Predicated region
    $region26: #{transformer_encoder_layer.5} parent=1 // pred_check
      _
    $region27: #{transformer_encoder_layer.5} parent=1 // pred_check_branch
      %187 = sbr.rel (0) target = $region29
    $region28: #{transformer_encoder_layer.5} parent=1 // pred_region
      _
    $region29: #{transformer_encoder_layer.5} parent=1 // pred_fallthru
      _
    %188 = vsyncpa [#allocation4], 1

// kernel: transformer_encoder_layer.6
$region0: #{transformer_encoder_layer.6}
  #allocation0 [shape = 'u32[]', space=smem, size = 0x4, offset = 0x4, fixed_abs, tag = 'smem constant byte address 0x4 - core index']
  #allocation1 [shape = 'u32[72,128]{1,0:T(1,128)}', space=vmem, size = 0x9000, scoped, tag = 'internal scratch']
  #allocation2 [shape = 'f32[4,8,1]{2,1,0:T(8,128)}', space=vmem, size = 0x4000, scoped, tag = 'scratch operand']
  #allocation3 [shape = 'f32[4,8,1]{2,1,0:T(8,128)}', space=vmem, size = 0x4000, scoped, tag = 'scratch operand']
  #allocation4 [shape = 'f32[4,8,8]{2,1,0:T(8,128)}', space=vmem, size = 0x4000, scoped, tag = 'scratch operand']
  %s0 = inlined_call_operand.vmem [shape: bf16[3,2,8,32], index: 0, kind: input, shape index: {}, may-alias: {0,1,2}]
  %s1 = inlined_call_operand.vmem [shape: bf16[3,2,8,32], index: 1, kind: input, shape index: {}, may-alias: {0,1,2}]
  %s2 = inlined_call_operand.vmem [shape: bf16[3,2,8,32], index: 2, kind: input, shape index: {}, may-alias: {0,1,2}]
  %s3 = inlined_call_operand.vmem [shape: f32[2,1,8], index: 3, kind: input, shape index: {}]
  %s4 = inlined_call_operand.vmem [shape: bf16[2,8,32], index: 4, kind: output, shape index: {}]
  %s5 = sld [smem:[#allocation0]]
  $region57: #{transformer_encoder_layer.6} parent=0
    _
  %s7 = ssub.s32 1, %s5
  %s8 = scalar_select 0, %s7, %s5
  loop: start=0, step=1, limit=4
  $region2: #{transformer_encoder_layer.6} parent=0 // loop_pre_header
    _
  $region3: #{transformer_encoder_layer.6} parent=0 // loop_header
    %s10 = sphi 0, %s14
    %p11 = scmp.ge.s32.totalorder %s10, 4
    %s17 = sphi 0, %s36
    %s18 = sphi 0, %s32
    %s19 = sphi 0, %s28
    %s20 = sphi 0, %s17
    %s21 = sphi 0, %s18
    %s22 = sphi 0, %s19
    %s23 = sphi 0, %s20
    %s24 = sphi 0, %s21
    %s25 = sphi 0, %s22
    %s41 = sphi 0, %s43
    %s44 = sphi 0, %s41
    %s45 = sphi 0, %s44
    %s61 = sphi 0, %s45
    %s69 = sphi 0, %s71
    %s72 = sphi 0, %s69
    %s73 = sphi 0, %s72
    %s89 = sphi 0, %s73
    %s97 = sphi 0, %s99
    %s100 = sphi 0, %s97
    %s101 = sphi 0, %s100
    %s117 = sphi 0, %s101
    %s125 = sphi 0, %s127
    %s128 = sphi 0, %s125
    %s129 = sphi 0, %s128
    %s145 = sphi 0, %s129
    %s153 = sphi 0, %s155
    %s156 = sphi 0, %s153
    %s157 = sphi 0, %s156
    %s173 = sphi 0, %s157
  $region4: #{transformer_encoder_layer.6} parent=0 // loop_header_branch
    %13 = sbr.rel (%p11) target = $region8
  $region5: #{transformer_encoder_layer.6} parent=0 // loop_body
    %s15 = ssub.s32 %s10, 1
    %s16 = ssub.s32 %s10, 2
    %s26 = sadd.s32 1, %s19
    %p27 = scmp.ge.s32.totalorder %s26, 1
    %s28 = scalar_select %p27, 0, %s26
    %s29 = sadd.s32 1, %s18
    %s30 = scalar_select %p27, %s29, %s18
    %p31 = scmp.ge.s32.totalorder %s30, 1
    %s32 = scalar_select %p31, 0, %s30
    %s33 = sadd.s32 1, %s17
    %s34 = scalar_select %p31, %s33, %s17
    %p35 = scmp.ge.s32.totalorder %s34, 2
    %s36 = scalar_select %p35, 0, %s34
    %s37 = ssub.s32 %s17, %s36
    %s38 = ssub.s32 %s18, %s32
    %s39 = sor.u32 %s37, %s38
    %p40 = scmp.eq.s32.totalorder %s39, 0
    %s42 = sadd.s32 %s41, 1
    %s43 = scalar_select %p40, %s41, %s42
    %p46 = pneg %p40
    %p47 = scmp.eq.s32.totalorder %s10, 1
    %p48 = por %p46, %p47
    %p49 = scmp.ne.s32.totalorder %s41, %s44
    %p50 = scmp.eq.s32.totalorder %s10, 0
    %p51 = por %p49, %p50
    %p52 = scmp.ne.s32.totalorder %s41, %s44
    %p53 = scmp.eq.s32.totalorder %s15, 1
    %p54 = por %p52, %p53
    %p55 = scmp.ne.s32.totalorder %s44, %s45
    %p56 = scmp.eq.s32.totalorder %s15, 0
    %p57 = por %p55, %p56
    %p58 = scmp.ne.s32.totalorder %s44, %s45
    %p59 = scmp.eq.s32.totalorder %s16, 1
    %p60 = por %p58, %p59
    %p62 = scmp.ne.s32.totalorder %s45, %s61
    %p63 = scmp.eq.s32.totalorder %s16, 0
    %p64 = por %p62, %p63
    %s65 = ssub.s32 %s17, %s36
    %s66 = ssub.s32 %s19, %s28
    %s67 = sor.u32 %s65, %s66
    %p68 = scmp.eq.s32.totalorder %s67, 0
    %s70 = sadd.s32 %s69, 1
    %s71 = scalar_select %p68, %s69, %s70
    %p74 = pneg %p68
    %p75 = scmp.eq.s32.totalorder %s10, 1
    %p76 = por %p74, %p75
    %p77 = scmp.ne.s32.totalorder %s69, %s72
    %p78 = scmp.eq.s32.totalorder %s10, 0
    %p79 = por %p77, %p78
    %p80 = scmp.ne.s32.totalorder %s69, %s72
    %p81 = scmp.eq.s32.totalorder %s15, 1
    %p82 = por %p80, %p81
    %p83 = scmp.ne.s32.totalorder %s72, %s73
    %p84 = scmp.eq.s32.totalorder %s15, 0
    %p85 = por %p83, %p84
    %p86 = scmp.ne.s32.totalorder %s72, %s73
    %p87 = scmp.eq.s32.totalorder %s16, 1
    %p88 = por %p86, %p87
    %p90 = scmp.ne.s32.totalorder %s73, %s89
    %p91 = scmp.eq.s32.totalorder %s16, 0
    %p92 = por %p90, %p91
    %s93 = ssub.s32 %s17, %s36
    %s94 = ssub.s32 %s19, %s28
    %s95 = sor.u32 %s93, %s94
    %p96 = scmp.eq.s32.totalorder %s95, 0
    %s98 = sadd.s32 %s97, 1
    %s99 = scalar_select %p96, %s97, %s98
    %p102 = pneg %p96
    %p103 = scmp.eq.s32.totalorder %s10, 1
    %p104 = por %p102, %p103
    %p105 = scmp.ne.s32.totalorder %s97, %s100
    %p106 = scmp.eq.s32.totalorder %s10, 0
    %p107 = por %p105, %p106
    %p108 = scmp.ne.s32.totalorder %s97, %s100
    %p109 = scmp.eq.s32.totalorder %s15, 1
    %p110 = por %p108, %p109
    %p111 = scmp.ne.s32.totalorder %s100, %s101
    %p112 = scmp.eq.s32.totalorder %s15, 0
    %p113 = por %p111, %p112
    %p114 = scmp.ne.s32.totalorder %s100, %s101
    %p115 = scmp.eq.s32.totalorder %s16, 1
    %p116 = por %p114, %p115
    %p118 = scmp.ne.s32.totalorder %s101, %s117
    %p119 = scmp.eq.s32.totalorder %s16, 0
    %p120 = por %p118, %p119
    %s121 = ssub.s32 %s17, %s36
    %s122 = ssub.s32 %s19, %s28
    %s123 = sor.u32 %s121, %s122
    %p124 = scmp.eq.s32.totalorder %s123, 0
    %s126 = sadd.s32 %s125, 1
    %s127 = scalar_select %p124, %s125, %s126
    %p130 = pneg %p124
    %p131 = scmp.eq.s32.totalorder %s10, 1
    %p132 = por %p130, %p131
    %p133 = scmp.ne.s32.totalorder %s125, %s128
    %p134 = scmp.eq.s32.totalorder %s10, 0
    %p135 = por %p133, %p134
    %p136 = scmp.ne.s32.totalorder %s125, %s128
    %p137 = scmp.eq.s32.totalorder %s15, 1
    %p138 = por %p136, %p137
    %p139 = scmp.ne.s32.totalorder %s128, %s129
    %p140 = scmp.eq.s32.totalorder %s15, 0
    %p141 = por %p139, %p140
    %p142 = scmp.ne.s32.totalorder %s128, %s129
    %p143 = scmp.eq.s32.totalorder %s16, 1
    %p144 = por %p142, %p143
    %p146 = scmp.ne.s32.totalorder %s129, %s145
    %p147 = scmp.eq.s32.totalorder %s16, 0
    %p148 = por %p146, %p147
    %s149 = ssub.s32 %s17, %s36
    %s150 = ssub.s32 %s18, %s32
    %s151 = sor.u32 %s149, %s150
    %p152 = scmp.eq.s32.totalorder %s151, 0
    %s154 = sadd.s32 %s153, 1
    %s155 = scalar_select %p152, %s153, %s154
    %p158 = pneg %p152
    %p159 = scmp.eq.s32.totalorder %s10, 1
    %p160 = por %p158, %p159
    %p161 = scmp.ne.s32.totalorder %s153, %s156
    %p162 = scmp.eq.s32.totalorder %s10, 0
    %p163 = por %p161, %p162
    %p164 = scmp.ne.s32.totalorder %s153, %s156
    %p165 = scmp.eq.s32.totalorder %s15, 1
    %p166 = por %p164, %p165
    %p167 = scmp.ne.s32.totalorder %s156, %s157
    %p168 = scmp.eq.s32.totalorder %s15, 0
    %p169 = por %p167, %p168
    %p170 = scmp.ne.s32.totalorder %s156, %s157
    %p171 = scmp.eq.s32.totalorder %s16, 1
    %p172 = por %p170, %p171
    %p174 = scmp.ne.s32.totalorder %s157, %s173
    %p175 = scmp.eq.s32.totalorder %s16, 0
    %p176 = por %p174, %p175
    %p177 = scmp.le.s32.totalorder 1, %s10
    %p178 = scmp.lt.s32.totalorder %s10, 3
    %p179 = pnand %p177, %p178
    %p180 = pneg %p179
    // Predicated region
    $region9: #{transformer_encoder_layer.6} parent=5 // pred_check
      _
    $region10: #{transformer_encoder_layer.6} parent=5 // pred_check_branch
      %182 = sbr.rel (%p179) target = $region12
    $region11: #{transformer_encoder_layer.6} parent=5 // pred_region
      %s183 = ssub.s32 %s10, 1
    $region12: #{transformer_encoder_layer.6} parent=5 // pred_fallthru
      _
    %p184 = scmp.lt.s32.totalorder %s10, 2
    // Predicated region
    $region13: #{transformer_encoder_layer.6} parent=5 // pred_check
      %p185 = pneg %p184
    $region14: #{transformer_encoder_layer.6} parent=5 // pred_check_branch
      %187 = sbr.rel (%p185) target = $region16
    $region15: #{transformer_encoder_layer.6} parent=5 // pred_region
      // Predicated region
      $region17: #{transformer_encoder_layer.6} parent=15 // pred_check
        %p188 = pneg %p51
      $region18: #{transformer_encoder_layer.6} parent=15 // pred_check_branch
        %190 = sbr.rel (%p188) target = $region20
      $region19: #{transformer_encoder_layer.6} parent=15 // pred_region
        %p191 = scmp.lt.s32.totalorder %s17, 1
        %s192 = scalar_select %p191, %s17, 1
        %p193 = scmp.lt.s32.totalorder %s18, 0
        %s194 = scalar_select %p193, %s18, 0
        %s195 = sadd.s32 %s194, %s192
        %s196 = smul.addr %s195, 4
        %s197 = scalar_lea.vmem %s0, %s196
      $region20: #{transformer_encoder_layer.6} parent=15 // pred_fallthru
        _
      // Predicated region
      $region21: #{transformer_encoder_layer.6} parent=15 // pred_check
        %p198 = pneg %p79
      $region22: #{transformer_encoder_layer.6} parent=15 // pred_check_branch
        %200 = sbr.rel (%p198) target = $region24
      $region23: #{transformer_encoder_layer.6} parent=15 // pred_region
        %p201 = scmp.lt.s32.totalorder %s17, 1
        %s202 = scalar_select %p201, %s17, 1
        %p203 = scmp.lt.s32.totalorder %s19, 0
        %s204 = scalar_select %p203, %s19, 0
        %s205 = sadd.s32 %s204, %s202
        %s206 = sadd.s32 %s205, 2
        %s207 = smul.addr %s206, 4
        %s208 = scalar_lea.vmem %s1, %s207
      $region24: #{transformer_encoder_layer.6} parent=15 // pred_fallthru
        _
      // Predicated region
      $region25: #{transformer_encoder_layer.6} parent=15 // pred_check
        %p209 = pneg %p107
      $region26: #{transformer_encoder_layer.6} parent=15 // pred_check_branch
        %211 = sbr.rel (%p209) target = $region28
      $region27: #{transformer_encoder_layer.6} parent=15 // pred_region
        %p212 = scmp.lt.s32.totalorder %s17, 1
        %s213 = scalar_select %p212, %s17, 1
        %p214 = scmp.lt.s32.totalorder %s19, 0
        %s215 = scalar_select %p214, %s19, 0
        %s216 = sadd.s32 %s215, %s213
        %s217 = sadd.s32 %s216, 4
        %s218 = smul.addr %s217, 4
        %s219 = scalar_lea.vmem %s2, %s218
      $region28: #{transformer_encoder_layer.6} parent=15 // pred_fallthru
        _
      // Predicated region
      $region29: #{transformer_encoder_layer.6} parent=15 // pred_check
        %p220 = pneg %p135
      $region30: #{transformer_encoder_layer.6} parent=15 // pred_check_branch
        %222 = sbr.rel (%p220) target = $region32
      $region31: #{transformer_encoder_layer.6} parent=15 // pred_region
        %p223 = scmp.lt.s32.totalorder %s17, 1
        %s224 = scalar_select %p223, %s17, 1
        %p225 = scmp.lt.s32.totalorder %s19, 0
        %s226 = scalar_select %p225, %s19, 0
        %s227 = sadd.s32 %s226, %s224
        %s228 = scalar_lea.vmem %s3, %s227
      $region32: #{transformer_encoder_layer.6} parent=15 // pred_fallthru
        _
    $region16: #{transformer_encoder_layer.6} parent=5 // pred_fallthru
      _
    %p229 = scmp.le.s32.totalorder 1, %s10
    %p230 = scmp.lt.s32.totalorder %s10, 3
    %p231 = pnand %p229, %p230
    %p232 = pneg %p231
    // Predicated region
    $region33: #{transformer_encoder_layer.6} parent=5 // pred_check
      _
    $region34: #{transformer_encoder_layer.6} parent=5 // pred_check_branch
      %234 = sbr.rel (%p231) target = $region36
    $region35: #{transformer_encoder_layer.6} parent=5 // pred_region
      %s235 = ssub.s32 %s10, 1
      %p236 = scmp.lt.s32.totalorder %s20, 1
      %s237 = scalar_select %p236, %s20, 1
      %p238 = scmp.lt.s32.totalorder %s21, 0
      %s239 = scalar_select %p238, %s21, 0
      %s240 = sadd.s32 %s239, %s237
      %s241 = smul.addr %s240, 4
      %s242 = scalar_lea.vmem %s0, %s241
      %p243 = pneg %p57
      %p244 = pneg %p54
      %p245 = scmp.lt.s32.totalorder %s20, 1
      %s246 = scalar_select %p245, %s20, 1
      %p247 = scmp.lt.s32.totalorder %s22, 0
      %s248 = scalar_select %p247, %s22, 0
      %s249 = sadd.s32 %s248, %s246
      %s250 = sadd.s32 %s249, 2
      %s251 = smul.addr %s250, 4
      %s252 = scalar_lea.vmem %s1, %s251
      %p253 = pneg %p85
      %p254 = pneg %p82
      %p255 = scmp.lt.s32.totalorder %s20, 1
      %s256 = scalar_select %p255, %s20, 1
      %p257 = scmp.lt.s32.totalorder %s22, 0
      %s258 = scalar_select %p257, %s22, 0
      %s259 = sadd.s32 %s258, %s256
      %s260 = sadd.s32 %s259, 4
      %s261 = smul.addr %s260, 4
      %s262 = scalar_lea.vmem %s2, %s261
      %p263 = pneg %p113
      %p264 = pneg %p110
      %p265 = scmp.lt.s32.totalorder %s20, 1
      %s266 = scalar_select %p265, %s20, 1
      %p267 = scmp.lt.s32.totalorder %s22, 0
      %s268 = scalar_select %p267, %s22, 0
      %s269 = sadd.s32 %s268, %s266
      %s270 = scalar_lea.vmem %s3, %s269
      %p271 = pneg %p141
      %p272 = pneg %p138
      %p273 = pneg %p169
      %p274 = pneg %p166
      %p275 = scmp.lt.s32.totalorder %s20, 1
      %s276 = scalar_select %p275, %s20, 1
      %p277 = scmp.lt.s32.totalorder %s21, 0
      %s278 = scalar_select %p277, %s21, 0
      %s279 = sadd.s32 %s278, %s276
      %s280 = smul.addr %s279, 4
      %s281 = scalar_lea.vmem %s4, %s280
      %p282 = scmp.lt.s32.totalorder %s20, 1
      %s283 = scalar_select %p282, %s20, 1
      %p284 = scmp.lt.s32.totalorder %s21, 0
      %s285 = scalar_select %p284, %s21, 0
      %s286 = sadd.s32 %s285, %s283
      %s287 = smul.addr %s286, 4
      %s288 = scalar_lea.vmem %s0, %s287
      %p289 = scmp.lt.s32.totalorder %s20, 1
      %s290 = scalar_select %p289, %s20, 1
      %p291 = scmp.lt.s32.totalorder %s22, 0
      %s292 = scalar_select %p291, %s22, 0
      %s293 = sadd.s32 %s292, %s290
      %s294 = sadd.s32 %s293, 2
      %s295 = smul.addr %s294, 4
      %s296 = scalar_lea.vmem %s1, %s295
      %p297 = scmp.lt.s32.totalorder %s20, 1
      %s298 = scalar_select %p297, %s20, 1
      %p299 = scmp.lt.s32.totalorder %s22, 0
      %s300 = scalar_select %p299, %s22, 0
      %s301 = sadd.s32 %s300, %s298
      %s302 = sadd.s32 %s301, 4
      %s303 = smul.addr %s302, 4
      %s304 = scalar_lea.vmem %s2, %s303
      %p305 = scmp.lt.s32.totalorder %s20, 1
      %s306 = scalar_select %p305, %s20, 1
      %p307 = scmp.lt.s32.totalorder %s22, 0
      %s308 = scalar_select %p307, %s22, 0
      %s309 = sadd.s32 %s308, %s306
      %s310 = scalar_lea.vmem %s3, %s309
      %p311 = scmp.lt.s32.totalorder %s20, 1
      %s312 = scalar_select %p311, %s20, 1
      %p313 = scmp.lt.s32.totalorder %s21, 0
      %s314 = scalar_select %p313, %s21, 0
      %s315 = sadd.s32 %s314, %s312
      %s316 = smul.addr %s315, 4
      %s317 = scalar_lea.vmem %s4, %s316
      %p319 = scmp.eq.s32.totalorder %s22, 0
      // Predicated region
      $region37: #{transformer_encoder_layer.6} parent=35 // pred_check
        %p320 = pneg %p319
      $region38: #{transformer_encoder_layer.6} parent=35 // pred_check_branch
        %322 = sbr.rel (%p320) target = $region40
      $region39: #{transformer_encoder_layer.6} parent=35 // pred_region
        %vm323 = vcmask 7168
        %324 = vst.msk [vmem:[#allocation2] sm:$0xff] %vm323, -inf
        %325 = vst.msk [vmem:[#allocation2 + $0x8] sm:$0xff] %vm323, -inf
        %326 = vst.msk [vmem:[#allocation2 + $0x10] sm:$0xff] %vm323, -inf
        %327 = vst.msk [vmem:[#allocation2 + $0x18] sm:$0xff] %vm323, -inf
        %328 = vst.msk [vmem:[#allocation3] sm:$0xff] %vm323, 0.0
        %329 = vst.msk [vmem:[#allocation3 + $0x8] sm:$0xff] %vm323, 0.0
        %330 = vst.msk [vmem:[#allocation3 + $0x10] sm:$0xff] %vm323, 0.0
        %331 = vst.msk [vmem:[#allocation3 + $0x18] sm:$0xff] %vm323, 0.0
        %vm332 = vcmask 64512
        %333 = vst.msk [vmem:[#allocation4] sm:$0xff] %vm332, 0.0
        %334 = vst.msk [vmem:[#allocation4 + $0x8] sm:$0xff] %vm332, 0.0
        %335 = vst.msk [vmem:[#allocation4 + $0x10] sm:$0xff] %vm332, 0.0
        %336 = vst.msk [vmem:[#allocation4 + $0x18] sm:$0xff] %vm332, 0.0
      $region40: #{transformer_encoder_layer.6} parent=35 // pred_fallthru
        _
      %v337 = vld [vmem:[%s310] sm:$0x1]
      %v338 = vld [vmem:[%s288] sm:$0xf]
      %v339 = vld [vmem:[%s296] sm:$0xf]
      %v340 = vld [vmem:[%s304] sm:$0xf]
      %v342 = vperm.slane %v337, 0
      %vm344 = vcmask 64512
      %v346 = vsel %vm344, %v338, 0
      %v349 = vsel %vm344, %v339, 0
      %351 = vmatpush.bf16.xpose.msra.mxu0 0
      %352 = vmatpush.bf16.xpose.msra.mxu0 0
      %353 = vmatpush.bf16.xpose.msra.mxu0 0
      %354 = vmatpush.bf16.xpose.msra.mxu0 0
      %355 = vmatpush.bf16.xpose.msra.mxu0 0
      %356 = vmatpush.bf16.xpose.msra.mxu0 0
      %357 = vmatpush.bf16.xpose.msra.mxu0 0
      %358 = vmatpush.bf16.xpose.msra.mxu0 %v349
      %359 = vmatmul.bf16.gmra.mxu0 %v346
      %v360 = vpop.f32.mrf.mxu0
      %v361 = vadd.f32 %v342, %v360
      %v362 = vpop.f32.mrf.mxu0
      %363 = vdwg.mxu0
      %v364 = vld [vmem:[#allocation2] sm:$0xff]
      %v365 = vsel %vm344, %v361, -inf
      %366 = vmax.xlane.f32.xlu0 %v365
      %v367 = vpop.xlane.xlu0 %366
      %v368 = vmax.f32 %v364, %v367
      %v369 = vsub.f32 %v364, %v368
      %v370 = vmul.f32 %v369, 1.442695
      %v371 = vpow.pop %v370
      %373 = vset.pattern.permute.xlu0 0
      %374 = vperm.xlu0 %373, %v368
      %v375 = vpop.permute.xlu0 %374
      %v377 = vsub.f32 %v361, %v375
      %v378 = vmul.f32 %v377, 1.442695
      %v379 = vpow.pop %v378
      %v380 = vld [vmem:[#allocation3] sm:$0xff]
      %v381 = vmul.f32 %v371, %v380
      %v382 = vsel %vm344, %v379, 0.0
      %383 = vadd.xlane.f32.xlu0 %v382
      %v384 = vpop.xlane.xlu0 %383
      %v385 = vadd.f32 %v381, %v384
      %vm386 = vcmask 7168
      %387 = vst.msk [vmem:[#allocation3] sm:$0xff] %vm386, %v385
      %v388 = vld [vmem:[#allocation4] sm:$0xff]
      %390 = vset.pattern.permute.xlu0 0
      %391 = vperm.xlu0 %390, %v371
      %v392 = vpop.permute.xlu0 %391
      %v394 = vmul.f32 %v392, %v388
      %v395 = vpack.c.bf16 %v379, %v379
      %v397 = vsel %vm344, %v395, 0
      %vm399 = vcmask 1043456
      %v401 = vsel %vm399, %v340, 0
      %403 = vmatpush.bf16.msra.mxu0 0
      %404 = vmatpush.bf16.msra.mxu0 0
      %405 = vmatpush.bf16.msra.mxu0 0
      %406 = vmatpush.bf16.msra.mxu0 0
      %407 = vmatpush.bf16.msra.mxu0 0
      %408 = vmatpush.bf16.msra.mxu0 0
      %409 = vmatpush.bf16.msra.mxu0 0
      %410 = vmatpush.bf16.msra.mxu0 %v401
      %411 = vmatmul.bf16.gmra.mxu0 %v397
      %v412 = vpop.f32.mrf.mxu0
      %v413 = vadd.f32 0.0, %v412
      %v414 = vpop.f32.mrf.mxu0
      %415 = vdwg.mxu0
      %v416 = vadd.f32 %v394, %v413
      %417 = vst.msk [vmem:[#allocation4] sm:$0xff] %vm344, %v416
      %418 = vst.msk [vmem:[#allocation2] sm:$0xff] %vm386, %v368
      %v419 = vld [vmem:[%s288] sm:$0xf]
      %v420 = vld [vmem:[%s296] sm:$0xf]
      %v421 = vld [vmem:[%s304] sm:$0xf]
      %v423 = vunpack.c.l.b16 %v419
      %v424 = vpack.c.b16 %v423, %v423
      %425 = vrot.lane.b32.xlu0 %v424, 120
      %v426 = vpop.permute.xlu0 %425
      %v428 = vunpack.c.l.b16 %v420
      %v429 = vpack.c.b16 %v428, %v428
      %430 = vrot.lane.b32.xlu0 %v429, 120
      %v431 = vpop.permute.xlu0 %430
      %v433 = vsel %vm344, %v426, 0
      %v436 = vsel %vm344, %v431, 0
      %438 = vmatpush.bf16.xpose.msra.mxu0 0
      %439 = vmatpush.bf16.xpose.msra.mxu0 0
      %440 = vmatpush.bf16.xpose.msra.mxu0 0
      %441 = vmatpush.bf16.xpose.msra.mxu0 0
      %442 = vmatpush.bf16.xpose.msra.mxu0 0
      %443 = vmatpush.bf16.xpose.msra.mxu0 0
      %444 = vmatpush.bf16.xpose.msra.mxu0 0
      %445 = vmatpush.bf16.xpose.msra.mxu0 %v436
      %446 = vmatmul.bf16.gmra.mxu0 %v433
      %v447 = vpop.f32.mrf.mxu0
      %v448 = vadd.f32 %v342, %v447
      %v449 = vpop.f32.mrf.mxu0
      %450 = vdwg.mxu0
      %s451 = scalar_lea.vmem [#allocation2], 8
      %v452 = vld [vmem:[%s451] sm:$0xff]
      %v453 = vsel %vm344, %v448, -inf
      %454 = vmax.xlane.f32.xlu0 %v453
      %v455 = vpop.xlane.xlu0 %454
      %v456 = vmax.f32 %v452, %v455
      %v457 = vsub.f32 %v452, %v456
      %v458 = vmul.f32 %v457, 1.442695
      %v459 = vpow.pop %v458
      %461 = vset.pattern.permute.xlu0 0
      %462 = vperm.xlu0 %461, %v456
      %v463 = vpop.permute.xlu0 %462
      %v465 = vsub.f32 %v448, %v463
      %v466 = vmul.f32 %v465, 1.442695
      %v467 = vpow.pop %v466
      %s468 = scalar_lea.vmem [#allocation3], 8
      %v469 = vld [vmem:[%s468] sm:$0xff]
      %v470 = vmul.f32 %v459, %v469
      %v471 = vsel %vm344, %v467, 0.0
      %472 = vadd.xlane.f32.xlu0 %v471
      %v473 = vpop.xlane.xlu0 %472
      %v474 = vadd.f32 %v470, %v473
      %475 = vst.msk [vmem:[%s468] sm:$0xff] %vm386, %v474
      %s476 = scalar_lea.vmem [#allocation4], 8
      %v477 = vld [vmem:[%s476] sm:$0xff]
      %479 = vset.pattern.permute.xlu0 0
      %480 = vperm.xlu0 %479, %v459
      %v481 = vpop.permute.xlu0 %480
      %v483 = vmul.f32 %v481, %v477
      %v484 = vpack.c.bf16 %v467, %v467
      %v486 = vunpack.c.l.b16 %v421
      %v487 = vpack.c.b16 %v486, %v486
      %488 = vrot.lane.b32.xlu0 %v487, 120
      %v489 = vpop.permute.xlu0 %488
      %v491 = vsel %vm344, %v484, 0
      %v494 = vsel %vm399, %v489, 0
      %496 = vmatpush.bf16.msra.mxu0 0
      %497 = vmatpush.bf16.msra.mxu0 0
      %498 = vmatpush.bf16.msra.mxu0 0
      %499 = vmatpush.bf16.msra.mxu0 0
      %500 = vmatpush.bf16.msra.mxu0 0
      %501 = vmatpush.bf16.msra.mxu0 0
      %502 = vmatpush.bf16.msra.mxu0 0
      %503 = vmatpush.bf16.msra.mxu0 %v494
      %504 = vmatmul.bf16.gmra.mxu0 %v491
      %v505 = vpop.f32.mrf.mxu0
      %v506 = vadd.f32 0.0, %v505
      %v507 = vpop.f32.mrf.mxu0
      %508 = vdwg.mxu0
      %v509 = vadd.f32 %v483, %v506
      %510 = vst.msk [vmem:[%s476] sm:$0xff] %vm344, %v509
      %511 = vst.msk [vmem:[%s451] sm:$0xff] %vm386, %v456
      %v512 = vld [vmem:[%s288] sm:$0xf]
      %v513 = vld [vmem:[%s296] sm:$0xf]
      %v514 = vld [vmem:[%s304] sm:$0xf]
      %v516 = vunpack.c.l.b16 %v512
      %v517 = vpack.c.b16 %v516, %v516
      %518 = vrot.lane.b32.xlu0 %v517, 112
      %v519 = vpop.permute.xlu0 %518
      %v521 = vunpack.c.l.b16 %v513
      %v522 = vpack.c.b16 %v521, %v521
      %523 = vrot.lane.b32.xlu0 %v522, 112
      %v524 = vpop.permute.xlu0 %523
      %v526 = vsel %vm344, %v519, 0
      %v529 = vsel %vm344, %v524, 0
      %531 = vmatpush.bf16.xpose.msra.mxu0 0
      %532 = vmatpush.bf16.xpose.msra.mxu0 0
      %533 = vmatpush.bf16.xpose.msra.mxu0 0
      %534 = vmatpush.bf16.xpose.msra.mxu0 0
      %535 = vmatpush.bf16.xpose.msra.mxu0 0
      %536 = vmatpush.bf16.xpose.msra.mxu0 0
      %537 = vmatpush.bf16.xpose.msra.mxu0 0
      %538 = vmatpush.bf16.xpose.msra.mxu0 %v529
      %539 = vmatmul.bf16.gmra.mxu0 %v526
      %v540 = vpop.f32.mrf.mxu0
      %v541 = vadd.f32 %v342, %v540
      %v542 = vpop.f32.mrf.mxu0
      %543 = vdwg.mxu0
      %s544 = scalar_lea.vmem [#allocation2], 16
      %v545 = vld [vmem:[%s544] sm:$0xff]
      %v546 = vsel %vm344, %v541, -inf
      %547 = vmax.xlane.f32.xlu0 %v546
      %v548 = vpop.xlane.xlu0 %547
      %v549 = vmax.f32 %v545, %v548
      %v550 = vsub.f32 %v545, %v549
      %v551 = vmul.f32 %v550, 1.442695
      %v552 = vpow.pop %v551
      %554 = vset.pattern.permute.xlu0 0
      %555 = vperm.xlu0 %554, %v549
      %v556 = vpop.permute.xlu0 %555
      %v558 = vsub.f32 %v541, %v556
      %v559 = vmul.f32 %v558, 1.442695
      %v560 = vpow.pop %v559
      %s561 = scalar_lea.vmem [#allocation3], 16
      %v562 = vld [vmem:[%s561] sm:$0xff]
      %v563 = vmul.f32 %v552, %v562
      %v564 = vsel %vm344, %v560, 0.0
      %565 = vadd.xlane.f32.xlu0 %v564
      %v566 = vpop.xlane.xlu0 %565
      %v567 = vadd.f32 %v563, %v566
      %568 = vst.msk [vmem:[%s561] sm:$0xff] %vm386, %v567
      %s569 = scalar_lea.vmem [#allocation4], 16
      %v570 = vld [vmem:[%s569] sm:$0xff]
      %572 = vset.pattern.permute.xlu0 0
      %573 = vperm.xlu0 %572, %v552
      %v574 = vpop.permute.xlu0 %573
      %v576 = vmul.f32 %v574, %v570
      %v577 = vpack.c.bf16 %v560, %v560
      %v579 = vunpack.c.l.b16 %v514
      %v580 = vpack.c.b16 %v579, %v579
      %581 = vrot.lane.b32.xlu0 %v580, 112
      %v582 = vpop.permute.xlu0 %581
      %v584 = vsel %vm344, %v577, 0
      %v587 = vsel %vm399, %v582, 0
      %589 = vmatpush.bf16.msra.mxu0 0
      %590 = vmatpush.bf16.msra.mxu0 0
      %591 = vmatpush.bf16.msra.mxu0 0
      %592 = vmatpush.bf16.msra.mxu0 0
      %593 = vmatpush.bf16.msra.mxu0 0
      %594 = vmatpush.bf16.msra.mxu0 0
      %595 = vmatpush.bf16.msra.mxu0 0
      %596 = vmatpush.bf16.msra.mxu0 %v587
      %597 = vmatmul.bf16.gmra.mxu0 %v584
      %v598 = vpop.f32.mrf.mxu0
      %v599 = vadd.f32 0.0, %v598
      %v600 = vpop.f32.mrf.mxu0
      %601 = vdwg.mxu0
      %v602 = vadd.f32 %v576, %v599
      %603 = vst.msk [vmem:[%s569] sm:$0xff] %vm344, %v602
      %604 = vst.msk [vmem:[%s544] sm:$0xff] %vm386, %v549
      %v605 = vld [vmem:[%s288] sm:$0xf]
      %v606 = vld [vmem:[%s296] sm:$0xf]
      %v607 = vld [vmem:[%s304] sm:$0xf]
      %v609 = vunpack.c.l.b16 %v605
      %v610 = vpack.c.b16 %v609, %v609
      %611 = vrot.lane.b32.xlu0 %v610, 104
      %v612 = vpop.permute.xlu0 %611
      %v614 = vunpack.c.l.b16 %v606
      %v615 = vpack.c.b16 %v614, %v614
      %616 = vrot.lane.b32.xlu0 %v615, 104
      %v617 = vpop.permute.xlu0 %616
      %v619 = vsel %vm344, %v612, 0
      %v622 = vsel %vm344, %v617, 0
      %624 = vmatpush.bf16.xpose.msra.mxu0 0
      %625 = vmatpush.bf16.xpose.msra.mxu0 0
      %626 = vmatpush.bf16.xpose.msra.mxu0 0
      %627 = vmatpush.bf16.xpose.msra.mxu0 0
      %628 = vmatpush.bf16.xpose.msra.mxu0 0
      %629 = vmatpush.bf16.xpose.msra.mxu0 0
      %630 = vmatpush.bf16.xpose.msra.mxu0 0
      %631 = vmatpush.bf16.xpose.msra.mxu0 %v622
      %632 = vmatmul.bf16.gmra.mxu0 %v619
      %v633 = vpop.f32.mrf.mxu0
      %v634 = vadd.f32 %v342, %v633
      %v635 = vpop.f32.mrf.mxu0
      %636 = vdwg.mxu0
      %s637 = scalar_lea.vmem [#allocation2], 24
      %v638 = vld [vmem:[%s637] sm:$0xff]
      %v639 = vsel %vm344, %v634, -inf
      %640 = vmax.xlane.f32.xlu0 %v639
      %v641 = vpop.xlane.xlu0 %640
      %v642 = vmax.f32 %v638, %v641
      %v643 = vsub.f32 %v638, %v642
      %v644 = vmul.f32 %v643, 1.442695
      %v645 = vpow.pop %v644
      %647 = vset.pattern.permute.xlu0 0
      %648 = vperm.xlu0 %647, %v642
      %v649 = vpop.permute.xlu0 %648
      %v651 = vsub.f32 %v634, %v649
      %v652 = vmul.f32 %v651, 1.442695
      %v653 = vpow.pop %v652
      %s654 = scalar_lea.vmem [#allocation3], 24
      %v655 = vld [vmem:[%s654] sm:$0xff]
      %v656 = vmul.f32 %v645, %v655
      %v657 = vsel %vm344, %v653, 0.0
      %658 = vadd.xlane.f32.xlu0 %v657
      %v659 = vpop.xlane.xlu0 %658
      %v660 = vadd.f32 %v656, %v659
      %661 = vst.msk [vmem:[%s654] sm:$0xff] %vm386, %v660
      %s662 = scalar_lea.vmem [#allocation4], 24
      %v663 = vld [vmem:[%s662] sm:$0xff]
      %665 = vset.pattern.permute.xlu0 0
      %666 = vperm.xlu0 %665, %v645
      %v667 = vpop.permute.xlu0 %666
      %v669 = vmul.f32 %v667, %v663
      %v670 = vpack.c.bf16 %v653, %v653
      %v672 = vunpack.c.l.b16 %v607
      %v673 = vpack.c.b16 %v672, %v672
      %674 = vrot.lane.b32.xlu0 %v673, 104
      %v675 = vpop.permute.xlu0 %674
      %v677 = vsel %vm344, %v670, 0
      %v680 = vsel %vm399, %v675, 0
      %682 = vmatpush.bf16.msra.mxu0 0
      %683 = vmatpush.bf16.msra.mxu0 0
      %684 = vmatpush.bf16.msra.mxu0 0
      %685 = vmatpush.bf16.msra.mxu0 0
      %686 = vmatpush.bf16.msra.mxu0 0
      %687 = vmatpush.bf16.msra.mxu0 0
      %688 = vmatpush.bf16.msra.mxu0 0
      %689 = vmatpush.bf16.msra.mxu0 %v680
      %690 = vmatmul.bf16.gmra.mxu0 %v677
      %v691 = vpop.f32.mrf.mxu0
      %v692 = vadd.f32 0.0, %v691
      %v693 = vpop.f32.mrf.mxu0
      %694 = vdwg.mxu0
      %v695 = vadd.f32 %v669, %v692
      %696 = vst.msk [vmem:[%s662] sm:$0xff] %vm344, %v695
      %697 = vst.msk [vmem:[%s637] sm:$0xff] %vm386, %v642
      // Predicated region
      $region41: #{transformer_encoder_layer.6} parent=35 // pred_check
        %p698 = pneg %p319
      $region42: #{transformer_encoder_layer.6} parent=35 // pred_check_branch
        %700 = sbr.rel (%p698) target = $region44
      $region43: #{transformer_encoder_layer.6} parent=35 // pred_region
        %v701 = vld [vmem:[#allocation4] sm:$0xff]
        %v702 = vld [vmem:[#allocation3] sm:$0xff]
        %v703 = vrcp.pop %v702
        %705 = vset.pattern.permute.xlu0 0
        %706 = vperm.xlu0 %705, %v703
        %v707 = vpop.permute.xlu0 %706
        %v709 = vmul.f32 %v701, %v707
        %v710 = vld [vmem:[%s476] sm:$0xff]
        %v711 = vld [vmem:[%s468] sm:$0xff]
        %v712 = vrcp.pop %v711
        %714 = vset.pattern.permute.xlu0 0
        %715 = vperm.xlu0 %714, %v712
        %v716 = vpop.permute.xlu0 %715
        %v718 = vmul.f32 %v710, %v716
        %v719 = vld [vmem:[%s569] sm:$0xff]
        %v720 = vld [vmem:[%s561] sm:$0xff]
        %v721 = vrcp.pop %v720
        %723 = vset.pattern.permute.xlu0 0
        %724 = vperm.xlu0 %723, %v721
        %v725 = vpop.permute.xlu0 %724
        %v727 = vmul.f32 %v719, %v725
        %v728 = vld [vmem:[%s662] sm:$0xff]
        %v729 = vld [vmem:[%s654] sm:$0xff]
        %v730 = vrcp.pop %v729
        %732 = vset.pattern.permute.xlu0 0
        %733 = vperm.xlu0 %732, %v730
        %v734 = vpop.permute.xlu0 %733
        %v736 = vmul.f32 %v728, %v734
        %738 = vrot.lane.b32.xlu0 %v718, 8
        %v739 = vpop.permute.xlu0 %738
        %742 = vrot.lane.b32.xlu0 %v727, 16
        %v743 = vpop.permute.xlu0 %742
        %746 = vrot.lane.b32.xlu0 %v736, 24
        %v747 = vpop.permute.xlu0 %746
        %v749 = vsel %vm344, %v709, %v739
        %vm750 = vcmask 130048
        %v751 = vsel %vm750, %v749, %v743
        %vm752 = vcmask 195584
        %v753 = vsel %vm752, %v751, %v747
        %v754 = vpack.c.bf16 %v753, %v753
        %vm755 = vcmask 257024
        %756 = vst.msk [vmem:[%s317] sm:$0xf] %vm755, %v754
      $region44: #{transformer_encoder_layer.6} parent=35 // pred_fallthru
        _
      %p757 = scmp.lt.s32.totalorder %s20, 1
      %s758 = scalar_select %p757, %s20, 1
      %p759 = scmp.lt.s32.totalorder %s21, 0
      %s760 = scalar_select %p759, %s21, 0
      %s761 = sadd.s32 %s760, %s758
      %s762 = smul.addr %s761, 4
      %s763 = scalar_lea.vmem %s4, %s762
      // Predicated region
      $region45: #{transformer_encoder_layer.6} parent=35 // pred_check
        %p764 = pneg %p166
      $region46: #{transformer_encoder_layer.6} parent=35 // pred_check_branch
        %766 = sbr.rel (%p764) target = $region48
      $region47: #{transformer_encoder_layer.6} parent=35 // pred_region
        _
      $region48: #{transformer_encoder_layer.6} parent=35 // pred_fallthru
        _
    $region36: #{transformer_encoder_layer.6} parent=5 // pred_fallthru
      _
    %p767 = scmp.le.s32.totalorder 2, %s10
    // Predicated region
    $region49: #{transformer_encoder_layer.6} parent=5 // pred_check
      %p768 = pneg %p767
    $region50: #{transformer_encoder_layer.6} parent=5 // pred_check_branch
      %770 = sbr.rel (%p768) target = $region52
    $region51: #{transformer_encoder_layer.6} parent=5 // pred_region
      %s771 = ssub.s32 %s10, 2
      // Predicated region
      $region53: #{transformer_encoder_layer.6} parent=51 // pred_check
        %p772 = pneg %p172
      $region54: #{transformer_encoder_layer.6} parent=51 // pred_check_branch
        %774 = sbr.rel (%p772) target = $region56
      $region55: #{transformer_encoder_layer.6} parent=51 // pred_region
        %p775 = scmp.lt.s32.totalorder %s23, 1
        %s776 = scalar_select %p775, %s23, 1
        %p777 = scmp.lt.s32.totalorder %s24, 0
        %s778 = scalar_select %p777, %s24, 0
        %s779 = sadd.s32 %s778, %s776
        %s780 = smul.addr %s779, 4
        %s781 = scalar_lea.vmem %s4, %s780
      $region56: #{transformer_encoder_layer.6} parent=51 // pred_fallthru
        _
    $region52: #{transformer_encoder_layer.6} parent=5 // pred_fallthru
      _
  $region6: #{transformer_encoder_layer.6} parent=0 // loop_footer
    %s14 = sadd.s32 1, %s10
  $region7: #{transformer_encoder_layer.6} parent=0 // loop_footer_branch
    %9 = sbr.rel target = $region3
  $region8: #{transformer_encoder_layer.6} parent=0 // loop_exit
    _

// kernel: transformer_encoder_layer.9
$region0: #{transformer_encoder_layer.9}
  #allocation0 [shape = 'u32[]', space=smem, size = 0x4, offset = 0x4, fixed_abs, tag = 'smem constant byte address 0x4 - core index']
  #allocation1 [shape = 'u32[72,128]{1,0:T(1,128)}', space=vmem, size = 0x9000, scoped, tag = 'internal scratch']
  #allocation2 [shape = 'f32[16,32]{1,0:T(8,128)}', space=vmem, size = 0x2000, scoped, tag = 'scratch operand']
  %s0 = inlined_call_operand.vmem [shape: bf16[16,64], index: 0, kind: input, shape index: {}]
  %s1 = inlined_call_operand.vmem [shape: bf16[64,32], index: 1, kind: input, shape index: {}]
  %s2 = inlined_call_operand.vmem [shape: f32[1,32], index: 2, kind: input, shape index: {}]
  %s3 = inlined_call_operand.vmem [shape: bf16[16,32], index: 3, kind: input, shape index: {}]
  %s4 = inlined_call_operand.vmem [shape: f32[1,32], index: 4, kind: input, shape index: {}]
  %s5 = inlined_call_operand.vmem [shape: f32[1,32], index: 5, kind: input, shape index: {}]
  %s6 = inlined_call_operand.vmem [shape: f32[16,32], index: 6, kind: output, shape index: {}]
  %s7 = sld [smem:[#allocation0]]
  $region42: #{transformer_encoder_layer.9} parent=0
    _
  %s9 = ssub.s32 1, %s7
  %s10 = scalar_select 0, %s9, %s7
  // Predicated region
  $region2: #{transformer_encoder_layer.9} parent=0 // pred_check
    _
  $region3: #{transformer_encoder_layer.9} parent=0 // pred_check_branch
    %12 = sbr.rel (0) target = $region5
  $region4: #{transformer_encoder_layer.9} parent=0 // pred_region
    _
  $region5: #{transformer_encoder_layer.9} parent=0 // pred_fallthru
    _
  // Predicated region
  $region6: #{transformer_encoder_layer.9} parent=0 // pred_check
    _
  $region7: #{transformer_encoder_layer.9} parent=0 // pred_check_branch
    %14 = sbr.rel (0) target = $region9
  $region8: #{transformer_encoder_layer.9} parent=0 // pred_region
    _
  $region9: #{transformer_encoder_layer.9} parent=0 // pred_fallthru
    _
  // Predicated region
  $region10: #{transformer_encoder_layer.9} parent=0 // pred_check
    _
  $region11: #{transformer_encoder_layer.9} parent=0 // pred_check_branch
    %16 = sbr.rel (0) target = $region13
  $region12: #{transformer_encoder_layer.9} parent=0 // pred_region
    _
  $region13: #{transformer_encoder_layer.9} parent=0 // pred_fallthru
    _
  // Predicated region
  $region14: #{transformer_encoder_layer.9} parent=0 // pred_check
    _
  $region15: #{transformer_encoder_layer.9} parent=0 // pred_check_branch
    %18 = sbr.rel (0) target = $region17
  $region16: #{transformer_encoder_layer.9} parent=0 // pred_region
    _
  $region17: #{transformer_encoder_layer.9} parent=0 // pred_fallthru
    _
  // Predicated region
  $region18: #{transformer_encoder_layer.9} parent=0 // pred_check
    _
  $region19: #{transformer_encoder_layer.9} parent=0 // pred_check_branch
    %20 = sbr.rel (0) target = $region21
  $region20: #{transformer_encoder_layer.9} parent=0 // pred_region
    _
  $region21: #{transformer_encoder_layer.9} parent=0 // pred_fallthru
    _
  // Predicated region
  $region22: #{transformer_encoder_layer.9} parent=0 // pred_check
    _
  $region23: #{transformer_encoder_layer.9} parent=0 // pred_check_branch
    %22 = sbr.rel (0) target = $region25
  $region24: #{transformer_encoder_layer.9} parent=0 // pred_region
    _
  $region25: #{transformer_encoder_layer.9} parent=0 // pred_fallthru
    _
  %p24 = scmp.eq.s32.totalorder 0, 0
  // Predicated region
  $region26: #{transformer_encoder_layer.9} parent=0 // pred_check
    %p25 = pneg %p24
  $region27: #{transformer_encoder_layer.9} parent=0 // pred_check_branch
    %27 = sbr.rel (%p25) target = $region29
  $region28: #{transformer_encoder_layer.9} parent=0 // pred_region
    %vm28 = vcmask 261120
    %29 = vst.msk [vmem:[#allocation2] sm:$0xff] %vm28, 0.0
    %30 = vst.msk [vmem:[#allocation2 + $0x8] sm:$0xff] %vm28, 0.0
  $region29: #{transformer_encoder_layer.9} parent=0 // pred_fallthru
    _
  %v31 = vld [vmem:[#allocation2] sm:$0xff]
  %v32 = vld [vmem:[#allocation2 + $0x8] sm:$0xff]
  %v33 = vld [vmem:[%s0] sm:$0xf]
  %v34 = vld [vmem:[%s0 + $0x4] sm:$0xf]
  %v35 = vld [vmem:[%s1] sm:$0xf]
  %v36 = vld [vmem:[%s1 + $0x4] sm:$0xf]
  %v37 = vld [vmem:[%s1 + $0x8] sm:$0xf]
  %v38 = vld [vmem:[%s1 + $0xc] sm:$0xf]
  %v39 = vld [vmem:[%s1 + $0x10] sm:$0xf]
  %v40 = vld [vmem:[%s1 + $0x14] sm:$0xf]
  %v41 = vld [vmem:[%s1 + $0x18] sm:$0xf]
  %v42 = vld [vmem:[%s1 + $0x1c] sm:$0xf]
  %v45 = vunpack.c.l.b16 %v33
  %v46 = vunpack.c.l.b16 %v34
  %v47 = vpack.c.b16 %v46, %v45
  %v56 = vunpack.c.l.b16 %v35
  %v57 = vunpack.c.l.b16 %v36
  %v58 = vunpack.c.l.b16 %v37
  %v59 = vunpack.c.l.b16 %v38
  %v60 = vunpack.c.l.b16 %v39
  %v61 = vunpack.c.l.b16 %v40
  %v62 = vunpack.c.l.b16 %v41
  %v63 = vunpack.c.l.b16 %v42
  %v64 = vpack.c.b16 %v57, %v56
  %v65 = vpack.c.b16 %v59, %v58
  %v66 = vpack.c.b16 %v61, %v60
  %v67 = vpack.c.b16 %v63, %v62
  %vm72 = vcmask 523264
  %v74 = vsel %vm72, %v47, 0
  %76 = vmatpush.bf16.msra.mxu0 0
  %77 = vmatpush.bf16.msra.mxu0 0
  %78 = vmatpush.bf16.msra.mxu0 0
  %79 = vmatpush.bf16.msra.mxu0 0
  %80 = vmatpush.bf16.msra.mxu0 %v67
  %81 = vmatpush.bf16.msra.mxu0 %v66
  %82 = vmatpush.bf16.msra.mxu0 %v65
  %83 = vmatpush.bf16.msra.mxu0 %v64
  %84 = vmatmul.bf16.gmra.mxu0 %v74
  %v85 = vpop.f32.mrf.mxu0
  %v86 = vadd.f32 0.0, %v85
  %v87 = vpop.f32.mrf.mxu0
  %v88 = vadd.f32 0.0, %v87
  %89 = vdwg.mxu0
  %v90 = vadd.f32 %v31, %v86
  %v91 = vadd.f32 %v32, %v88
  %vm92 = vcmask 261120
  %93 = vst.msk [vmem:[#allocation2] sm:$0xff] %vm92, %v90
  %94 = vst.msk [vmem:[#allocation2 + $0x8] sm:$0xff] %vm92, %v91
  // Predicated region
  $region30: #{transformer_encoder_layer.9} parent=0 // pred_check
    %p95 = pneg %p24
  $region31: #{transformer_encoder_layer.9} parent=0 // pred_check_branch
    %97 = sbr.rel (%p95) target = $region33
  $region32: #{transformer_encoder_layer.9} parent=0 // pred_region
    %v98 = vld [vmem:[#allocation2] sm:$0xff]
    %v99 = vld [vmem:[#allocation2 + $0x8] sm:$0xff]
    %v100 = vld [vmem:[%s2] sm:$0x1]
    %v102 = vperm.slane %v100, 0
    %v104 = vadd.f32 %v98, %v102
    %v105 = vadd.f32 %v99, %v102
    %v106 = vld [vmem:[%s3] sm:$0xf]
    %v107 = vld [vmem:[%s3 + $0x4] sm:$0xf]
    %v108 = vunpack.c.l.bf16 %v106
    %v109 = vunpack.c.l.bf16 %v107
    %v110 = vadd.f32 %v104, %v108
    %v111 = vadd.f32 %v105, %v109
    %v112 = vsel %vm92, %v110, 0.0
    %113 = vadd.xlane.f32.xlu0 %v112
    %v114 = vpop.xlane.xlu0 %113
    %v115 = vsel %vm92, %v111, 0.0
    %116 = vadd.xlane.f32.xlu0 %v115
    %v117 = vpop.xlane.xlu0 %116
    %v118 = vrcp.pop 32.0
    %v119 = vmul.f32 32.0, %v118
    %v120 = vsub.f32 1.0, %v119
    %v121 = vmul.f32 %v118, %v120
    %v122 = vadd.f32 %v118, %v121
    %vm123 = vweird.f32 %v118
    %v124 = vsel %vm123, %v118, %v122
    %v125 = vmul.f32 %v114, %v124
    %v126 = vmul.f32 %v117, %v124
    %v127 = vsub.f32 %v110, %v125
    %v128 = vsub.f32 %v111, %v126
    %v129 = vmul.f32 %v127, %v127
    %v130 = vmul.f32 %v128, %v128
    %v131 = vsel %vm92, %v129, 0.0
    %132 = vadd.xlane.f32.xlu0 %v131
    %v133 = vpop.xlane.xlu0 %132
    %v134 = vsel %vm92, %v130, 0.0
    %135 = vadd.xlane.f32.xlu0 %v134
    %v136 = vpop.xlane.xlu0 %135
    %v137 = vmul.f32 %v133, %v124
    %v138 = vmul.f32 %v136, %v124
    %v139 = vadd.f32 %v137, 1e-05
    %v140 = vadd.f32 %v138, 1e-05
    %v141 = vrsqrt.pop %v139
    %v142 = vmul.f32 %v141, %v139
    %v143 = vmul.f32 %v142, %v141
    %v144 = vmul.f32 0.5, %v143
    %v145 = vsub.f32 1.5, %v144
    %v146 = vmul.f32 %v141, %v145
    %vm147 = vweird.f32 %v139
    %vm148 = vweird.f32 %v141
    %vm149 = vmor %vm147, %vm148
    %v150 = vsel %vm149, %v141, %v146
    %v151 = vrsqrt.pop %v140
    %v152 = vmul.f32 %v151, %v140
    %v153 = vmul.f32 %v152, %v151
    %v154 = vmul.f32 0.5, %v153
    %v155 = vsub.f32 1.5, %v154
    %v156 = vmul.f32 %v151, %v155
    %vm157 = vweird.f32 %v140
    %vm158 = vweird.f32 %v151
    %vm159 = vmor %vm157, %vm158
    %v160 = vsel %vm159, %v151, %v156
    %v161 = vmul.f32 %v127, %v150
    %v162 = vmul.f32 %v128, %v160
    %v163 = vld [vmem:[%s4] sm:$0x1]
    %v165 = vperm.slane %v163, 0
    %v167 = vmul.f32 %v161, %v165
    %v168 = vmul.f32 %v162, %v165
    %v169 = vld [vmem:[%s5] sm:$0x1]
    %v171 = vperm.slane %v169, 0
    %v173 = vadd.f32 %v167, %v171
    %v174 = vadd.f32 %v168, %v171
    %175 = vst.msk [vmem:[%s6] sm:$0xff] %vm92, %v173
    %176 = vst.msk [vmem:[%s6 + $0x8] sm:$0xff] %vm92, %v174
  $region33: #{transformer_encoder_layer.9} parent=0 // pred_fallthru
    _
  // Predicated region
  $region34: #{transformer_encoder_layer.9} parent=0 // pred_check
    _
  $region35: #{transformer_encoder_layer.9} parent=0 // pred_check_branch
    %178 = sbr.rel (0) target = $region37
  $region36: #{transformer_encoder_layer.9} parent=0 // pred_region
    _
  $region37: #{transformer_encoder_layer.9} parent=0 // pred_fallthru
    _
  // Predicated region
  $region38: #{transformer_encoder_layer.9} parent=0 // pred_check
    _
  $region39: #{transformer_encoder_layer.9} parent=0 // pred_check_branch
    %180 = sbr.rel (0) target = $region41
  $region40: #{transformer_encoder_layer.9} parent=0 // pred_region
    _
  $region41: #{transformer_encoder_layer.9} parent=0 // pred_fallthru
    _

</llo_original>
